<compile_context>
chip_gen: v7x
topology: tpu7x:2x2x1
jax: 0.10.0
libtpu: 0.0.40
codegen_flags: <defaults>
</compile_context>

<pallas_src>
import math

import jax
import jax.numpy as jnp
import numpy as np
from jax.experimental import pallas as pl
from jax.experimental.pallas import tpu as pltpu


def _round_up(x, m):
    return ((x + m - 1) // m) * m


# -----------------------------------------------------------------------------
# Weight prep: conv (KH, KW, Ci, Co) -> banded block-Toeplitz (KH, k_pad, n_pad)
# built host-side with NumPy.  row_flat(W*Ci) @ T[kh] applies the kh-th row of
# taps with 'same' zero padding along W baked into the band; extra padded
# lanes are all-zero rows/columns.
# -----------------------------------------------------------------------------
def _band_toeplitz_np(w_hwio, W, k_pad, n_pad):
    w = np.asarray(w_hwio, dtype=np.float32)
    KH, KW, Ci, Co = w.shape
    pw = KW // 2
    T = np.zeros((KH, k_pad, n_pad), np.float32)
    for jo in range(W):
        for kw in range(KW):
            ji = jo + kw - pw
            if 0 <= ji < W:
                T[:, ji * Ci:(ji + 1) * Ci, jo * Co:(jo + 1) * Co] = w[:, kw]
    return T


def _pick_tile_h(H, N):
    """Row-tile height.

    Prefer the largest divisor of H that (a) is a multiple of 8 (aligned
    output sublane tiles), (b) keeps the MXU LHS M dim (TH+2) at or below one
    ~256-row systolic pass, and (c) when N == 1, still yields >= 2 grid points
    so both v7x TensorCores get work (v5e/v6e are single-TC).
    """
    divisors = [d for d in range(1, H + 1) if H % d == 0]
    cands = [d for d in divisors if d % 8 == 0 and d <= 256]
    if not cands:
        cands = [H]                      # full-extent block (no (8,128) constraint)
    if N < 2:
        split = [d for d in cands if H // d >= 2]
        if split:
            cands = split
    return max(cands)


def _vmem_limit_bytes(frac=0.85):
    # Per-generation VMEM budget: ~108 MiB on v5e/v6e (128 MiB physical),
    # ~54 MiB on v7x (64 MiB physical).  Fall back to the compiler default.
    try:
        info = pltpu.get_tpu_info()
    except Exception:
        return None
    cap = getattr(info, "vmem_capacity_bytes", None)
    if cap is None:
        return None
    return int(cap * frac)


# -----------------------------------------------------------------------------
# Fused kernel: per (batch, row-tile) grid point compute
#   deno[tile] = x[tile] + b1 + conv1( mask( conv0(x_window) + b0 ) )
# with ftrs kept entirely on-chip.
# -----------------------------------------------------------------------------
def _make_fused_kernel(H, KH, TH, LANE_IN, LANE_MID, compute_dtype):
    PH = KH // 2                 # per-conv row halo (1 for 3x3)
    TH_E = TH + 2 * PH           # extended ftrs rows needed by conv1
    TH_X = TH + 4 * PH           # input rows needed by the fused stack

    def kernel(xw_ref, t0_ref, b0_ref, t1_ref, b1_ref, o_ref):
        h = pl.program_id(1)

        x_f32 = xw_ref[0, 0].astype(jnp.float32)      # (TH_X, LANE_IN)
        x_c = x_f32.astype(compute_dtype)              # bf16 copy for the MXU

        # ---- conv0: bias folded into the f32 accumulator init --------------
        # TODO(synk): tap slices at sublane offsets 1/2 may relayout; if the
        # bundle dump shows copies, pre-shift once via pltpu.roll (XLU slot).
        acc0 = jnp.broadcast_to(b0_ref[...], (TH_E, LANE_MID))
        for kh in range(KH):                           # 3 dense MXU matmuls
            acc0 = acc0 + jnp.dot(x_c[kh:kh + TH_E, :], t0_ref[kh],
                                  preferred_element_type=jnp.float32)

        # Rows of the extended ftrs tile outside the image must be exactly
        # zero: conv1's 'same' padding pads ftrs (not conv0-of-padded-x + b0).
        g = h * TH - PH + jax.lax.broadcasted_iota(jnp.int32, (TH_E, 1), 0)
        acc0 = jnp.where((g >= 0) & (g < H), acc0, 0.0)
        ftrs = acc0.astype(compute_dtype)              # stays in VMEM only

        # TODO(synk): attn[0](ftrs, None) residual omitted (source not given).

        # ---- conv1 + bias + input residual ----------------------------------
        acc1 = x_f32[2 * PH:2 * PH + TH, :] + jnp.broadcast_to(
            b1_ref[...], (TH, LANE_IN))
        for kh in range(KH):
            acc1 = acc1 + jnp.dot(ftrs[kh:kh + TH, :], t1_ref[kh],
                                  preferred_element_type=jnp.float32)

        o_ref[0] = acc1.astype(o_ref.dtype)            # lane-dense (TH, LANE_IN)

    return kernel


# -----------------------------------------------------------------------------
# ConvDenoiser forward (net_depth=1, attn_type='na' => no spix net, sims=None).
# -----------------------------------------------------------------------------
def conv_denoiser_forward(x_nchw, params, *, compute_dtype=jnp.bfloat16,
                          tile_h=None):
    """x_nchw: (N, in_dim, H, W).  Returns {'deno': (N, in_dim, H, W), 'sims': None}."""
    N, Cin, H, W = x_nchw.shape
    KH = params["w0"].shape[0]
    dim = params["w0"].shape[3]
    PH = KH // 2

    LANE_IN = _round_up(W * Cin, 128)    # lane-dense, 128-aligned stores
    LANE_MID = _round_up(W * dim, 128)

    TH = tile_h if tile_h is not None else _pick_tile_h(H, N)
    if H % TH != 0:
        TH = H
    n_th = H // TH
    TH_X = TH + 4 * PH

    # NCHW -> lane-dense (N, H, W*Cin), zero-padded to LANE_IN lanes; only H is
    # padded by the fused halo (W 'same' padding lives in the Toeplitz band).
    x_flat = jnp.transpose(x_nchw, (0, 2, 3, 1)).reshape(N, H, W * Cin)
    xp = jnp.pad(x_flat, ((0, 0), (2 * PH, 2 * PH), (0, LANE_IN - W * Cin)))

    # Materialize the halo'd row windows wrapper-side so plain BlockSpec
    # auto-pipelines them (x DMA overlaps compute, megacore-safe); the extra
    # 4 rows per tile duplicated in HBM are negligible.
    xw = jnp.stack([xp[:, h * TH:h * TH + TH_X, :] for h in range(n_th)],
                   axis=1)                               # (N, n_th, TH_X, LANE_IN)

    T0 = jnp.asarray(_band_toeplitz_np(params["w0"], W, LANE_IN, LANE_MID),
                     compute_dtype)                      # (KH, LANE_IN, LANE_MID)
    T1 = jnp.asarray(_band_toeplitz_np(params["w1"], W, LANE_MID, LANE_IN),
                     compute_dtype)                      # (KH, LANE_MID, LANE_IN)
    b0t = np.zeros((1, LANE_MID), np.float32)
    b0t[0, :W * dim] = np.tile(np.asarray(params["b0"], np.float32), W)
    b1t = np.zeros((1, LANE_IN), np.float32)
    b1t[0, :W * Cin] = np.tile(np.asarray(params["b1"], np.float32), W)
    b0t = jnp.asarray(b0t)
    b1t = jnp.asarray(b1t)

    kernel = _make_fused_kernel(H, KH, TH, LANE_IN, LANE_MID, compute_dtype)

    # Advisory cost for XLA scheduling (actual executed Toeplitz FLOPs).
    flops = 2 * KH * N * ((H + n_th * 2 * PH) + H) * LANE_IN * LANE_MID
    itemsize = jnp.dtype(x_nchw.dtype).itemsize
    bytes_accessed = int(xw.size * xw.dtype.itemsize
                         + T0.size * T0.dtype.itemsize
                         + T1.size * T1.dtype.itemsize
                         + b0t.size * 4 + b1t.size * 4
                         + N * H * LANE_IN * itemsize)

    const = dict(pipeline_mode=pl.Buffered(1))  # grid-invariant: single-buffered

    cp_kwargs = dict(dimension_semantics=("parallel", "parallel"))
    vl = _vmem_limit_bytes()
    if vl is not None:
        cp_kwargs["vmem_limit_bytes"] = vl

    deno_flat = pl.pallas_call(
        kernel,
        out_shape=jax.ShapeDtypeStruct((N, H, LANE_IN), x_nchw.dtype),
        grid=(N, n_th),
        in_specs=[
            pl.BlockSpec((1, 1, TH_X, LANE_IN), lambda n, h: (n, h, 0, 0)),      # x windows
            pl.BlockSpec((KH, LANE_IN, LANE_MID), lambda n, h: (0, 0, 0), **const),  # T0
            pl.BlockSpec((1, LANE_MID), lambda n, h: (0, 0), **const),               # b0
            pl.BlockSpec((KH, LANE_MID, LANE_IN), lambda n, h: (0, 0, 0), **const),  # T1
            pl.BlockSpec((1, LANE_IN), lambda n, h: (0, 0), **const),                # b1
        ],
        out_specs=pl.BlockSpec((1, TH, LANE_IN), lambda n, h: (n, h, 0)),
        compiler_params=pltpu.CompilerParams(**cp_kwargs),
        cost_estimate=pl.CostEstimate(flops=int(flops), transcendentals=0,
                                      bytes_accessed=bytes_accessed),
    )(xw, T0, b0t, T1, b1t)

    deno = deno_flat[..., :W * Cin].reshape(N, H, W, Cin)
    deno = jnp.transpose(deno, (0, 3, 1, 2))
    return {"deno": deno, "sims": None}   # use_sp_net == False with defaults


# -----------------------------------------------------------------------------
# Deterministic parameter init (PyTorch Conv2d-style uniform bounds), HWIO.
# -----------------------------------------------------------------------------
def init_params(key, in_dim, dim, ksize=3):
    k = jax.random.split(key, 4)
    bound0 = 1.0 / math.sqrt(in_dim * ksize * ksize)
    bound1 = 1.0 / math.sqrt(dim * ksize * ksize)
    return {
        "w0": jax.random.uniform(k[0], (ksize, ksize, in_dim, dim),
                                 jnp.float32, -bound0, bound0),
        "b0": jax.random.uniform(k[1], (dim,), jnp.float32, -bound0, bound0),
        "w1": jax.random.uniform(k[2], (ksize, ksize, dim, in_dim),
                                 jnp.float32, -bound1, bound1),
        "b1": jax.random.uniform(k[3], (in_dim,), jnp.float32, -bound1, bound1),
    }


# -----------------------------------------------------------------------------
# Pure-JAX f32 reference for the same (attention-omitted) forward.
# -----------------------------------------------------------------------------
def _conv_ref(x_nchw, w_hwio, b):
    w_oihw = jnp.transpose(w_hwio, (3, 2, 0, 1))
    out = jax.lax.conv_general_dilated(
        x_nchw, w_oihw, window_strides=(1, 1), padding="SAME",
        dimension_numbers=("NCHW", "OIHW", "NCHW"),
        precision=jax.lax.Precision.HIGHEST)
    return out + b[None, :, None, None]


def _forward_ref(x_nchw, params):
    ftrs = _conv_ref(x_nchw, params["w0"], params["b0"])
    return x_nchw + _conv_ref(ftrs, params["w1"], params["b1"])


if __name__ == "__main__":
    key = jax.random.PRNGKey(0)
    kx, kp = jax.random.split(key)

    N, in_dim, H, W = 2, 4, 16, 16
    dim = 32

    x = jax.random.normal(kx, (N, in_dim, H, W), jnp.float32)
    params = init_params(kp, in_dim, dim, ksize=3)

    out = conv_denoiser_forward(x, params)
    deno = jax.block_until_ready(out["deno"])

    assert deno.shape == (N, in_dim, H, W)
    assert out["sims"] is None

    ref = jax.block_until_ready(_forward_ref(x, params))
    # bf16 MXU operands / bf16 ftrs intermediate (f32 accumulation) =>
    # loosened tolerance vs the pure-f32 reference.
    np.testing.assert_allclose(np.asarray(deno), np.asarray(ref),
                               rtol=5e-2, atol=5e-2)

    print("KERNEL_OK")
</pallas_src>

<mosaic_0001>
module attributes {stable_mosaic.version = 11 : i64} {
  func.func @kernel(%arg0: i32, %arg1: i32, %arg2: memref<1x1x20x128xf32, #tpu.memory_space<vmem>>, %arg3: memref<3x128x512xbf16, #tpu.memory_space<vmem>>, %arg4: memref<1x512xf32, #tpu.memory_space<vmem>>, %arg5: memref<3x512x128xbf16, #tpu.memory_space<vmem>>, %arg6: memref<1x128xf32, #tpu.memory_space<vmem>>, %arg7: memref<1x16x128xf32, #tpu.memory_space<vmem>>) attributes {dimension_semantics = [#tpu.dimension_semantics<parallel>, #tpu.dimension_semantics<parallel>], iteration_bounds = array<i64: 2, 1>, scalar_prefetch = 0 : i64, scratch_operands = 0 : i64, tpu.core_type = #tpu.core_type<tc>, window_params = [{transform_indices = @transform_0, window_bounds = array<i64: 1, 1, 20, 128>}, {pipeline_mode = #tpu.pipeline_mode<synchronous>, transform_indices = @transform_1, window_bounds = array<i64: 3, 128, 512>}, {pipeline_mode = #tpu.pipeline_mode<synchronous>, transform_indices = @transform_2, window_bounds = array<i64: 1, 512>}, {pipeline_mode = #tpu.pipeline_mode<synchronous>, transform_indices = @transform_3, window_bounds = array<i64: 3, 512, 128>}, {pipeline_mode = #tpu.pipeline_mode<synchronous>, transform_indices = @transform_4, window_bounds = array<i64: 1, 128>}, {transform_indices = @transform_5, window_bounds = array<i64: 1, 16, 128>}]} {
    %c0 = arith.constant 0 : index
    %c0_0 = arith.constant 0 : index
    %c0_1 = arith.constant 0 : index
    %c0_2 = arith.constant 0 : index
    %0 = vector.load %arg2[%c0, %c0_0, %c0_1, %c0_2] : memref<1x1x20x128xf32, #tpu.memory_space<vmem>>, vector<1x1x20x128xf32>
    %1 = vector.shape_cast %0 : vector<1x1x20x128xf32> to vector<20x128xf32>
    %2 = arith.truncf %1 : vector<20x128xf32> to vector<20x128xbf16>
    %c0_3 = arith.constant 0 : index
    %c0_4 = arith.constant 0 : index
    %3 = vector.load %arg4[%c0_3, %c0_4] : memref<1x512xf32, #tpu.memory_space<vmem>>, vector<1x512xf32>
    %4 = vector.shape_cast %3 : vector<1x512xf32> to vector<1x512xf32>
    %5 = vector.broadcast %4 : vector<1x512xf32> to vector<18x512xf32>
    %6 = vector.extract_strided_slice %2 {offsets = [0, 0], sizes = [18, 128], strides = [1, 1]} : vector<20x128xbf16> to vector<18x128xbf16>
    %c0_5 = arith.constant 0 : index
    %c0_6 = arith.constant 0 : index
    %c0_7 = arith.constant 0 : index
    %7 = vector.load %arg3[%c0_5, %c0_6, %c0_7] : memref<3x128x512xbf16, #tpu.memory_space<vmem>>, vector<1x128x512xbf16>
    %8 = vector.shape_cast %7 : vector<1x128x512xbf16> to vector<128x512xbf16>
    %cst = arith.constant dense<0.000000e+00> : vector<18x512xf32>
    %9 = tpu.matmul %6, %8, %cst {dimension_numbers = #tpu.dot_dimension_numbers<[1], [0], [0], [1], [0, 0, 1, 1], [], []>} : vector<18x128xbf16>, vector<128x512xbf16>, vector<18x512xf32> -> vector<18x512xf32>
    %10 = arith.addf %5, %9 : vector<18x512xf32>
    %11 = vector.extract_strided_slice %2 {offsets = [1, 0], sizes = [18, 128], strides = [1, 1]} : vector<20x128xbf16> to vector<18x128xbf16>
    %c1 = arith.constant 1 : index
    %c0_8 = arith.constant 0 : index
    %c0_9 = arith.constant 0 : index
    %12 = vector.load %arg3[%c1, %c0_8, %c0_9] : memref<3x128x512xbf16, #tpu.memory_space<vmem>>, vector<1x128x512xbf16>
    %13 = vector.shape_cast %12 : vector<1x128x512xbf16> to vector<128x512xbf16>
    %cst_10 = arith.constant dense<0.000000e+00> : vector<18x512xf32>
    %14 = tpu.matmul %11, %13, %cst_10 {dimension_numbers = #tpu.dot_dimension_numbers<[1], [0], [0], [1], [0, 0, 1, 1], [], []>} : vector<18x128xbf16>, vector<128x512xbf16>, vector<18x512xf32> -> vector<18x512xf32>
    %15 = arith.addf %10, %14 : vector<18x512xf32>
    %16 = vector.extract_strided_slice %2 {offsets = [2, 0], sizes = [18, 128], strides = [1, 1]} : vector<20x128xbf16> to vector<18x128xbf16>
    %c2 = arith.constant 2 : index
    %c0_11 = arith.constant 0 : index
    %c0_12 = arith.constant 0 : index
    %17 = vector.load %arg3[%c2, %c0_11, %c0_12] : memref<3x128x512xbf16, #tpu.memory_space<vmem>>, vector<1x128x512xbf16>
    %18 = vector.shape_cast %17 : vector<1x128x512xbf16> to vector<128x512xbf16>
    %cst_13 = arith.constant dense<0.000000e+00> : vector<18x512xf32>
    %19 = tpu.matmul %16, %18, %cst_13 {dimension_numbers = #tpu.dot_dimension_numbers<[1], [0], [0], [1], [0, 0, 1, 1], [], []>} : vector<18x128xbf16>, vector<128x512xbf16>, vector<18x512xf32> -> vector<18x512xf32>
    %20 = arith.addf %15, %19 : vector<18x512xf32>
    %c16_i32 = arith.constant 16 : i32
    %21 = arith.muli %arg1, %c16_i32 : i32
    %c1_i32 = arith.constant 1 : i32
    %22 = arith.subi %21, %c1_i32 : i32
    %23 = tpu.iota {dimensions = array<i32: 0>} : vector<18x1xi32>
    %24 = vector.broadcast %22 : i32 to vector<18x1xi32>
    %25 = arith.addi %24, %23 : vector<18x1xi32>
    %c0_i32 = arith.constant 0 : i32
    %26 = vector.broadcast %c0_i32 : i32 to vector<18x1xi32>
    %27 = arith.cmpi sge, %25, %26 : vector<18x1xi32>
    %c16_i32_14 = arith.constant 16 : i32
    %28 = vector.broadcast %c16_i32_14 : i32 to vector<18x1xi32>
    %29 = arith.cmpi slt, %25, %28 : vector<18x1xi32>
    %30 = arith.andi %27, %29 : vector<18x1xi1>
    %cst_15 = arith.constant 0.000000e+00 : f32
    %31 = vector.shape_cast %30 : vector<18x1xi1> to vector<18x1xi1>
    %32 = vector.broadcast %31 : vector<18x1xi1> to vector<18x512xi1>
    %33 = vector.broadcast %cst_15 : f32 to vector<18x512xf32>
    %34 = arith.select %32, %20, %33 : vector<18x512xi1>, vector<18x512xf32>
    %35 = arith.truncf %34 : vector<18x512xf32> to vector<18x512xbf16>
    %36 = vector.extract_strided_slice %1 {offsets = [2, 0], sizes = [16, 128], strides = [1, 1]} : vector<20x128xf32> to vector<16x128xf32>
    %c0_16 = arith.constant 0 : index
    %c0_17 = arith.constant 0 : index
    %37 = vector.load %arg6[%c0_16, %c0_17] : memref<1x128xf32, #tpu.memory_space<vmem>>, vector<1x128xf32>
    %38 = vector.shape_cast %37 : vector<1x128xf32> to vector<1x128xf32>
    %39 = vector.broadcast %38 : vector<1x128xf32> to vector<16x128xf32>
    %40 = arith.addf %36, %39 : vector<16x128xf32>
    %41 = vector.extract_strided_slice %35 {offsets = [0, 0], sizes = [16, 512], strides = [1, 1]} : vector<18x512xbf16> to vector<16x512xbf16>
    %c0_18 = arith.constant 0 : index
    %c0_19 = arith.constant 0 : index
    %c0_20 = arith.constant 0 : index
    %42 = vector.load %arg5[%c0_18, %c0_19, %c0_20] : memref<3x512x128xbf16, #tpu.memory_space<vmem>>, vector<1x512x128xbf16>
    %43 = vector.shape_cast %42 : vector<1x512x128xbf16> to vector<512x128xbf16>
    %cst_21 = arith.constant dense<0.000000e+00> : vector<16x128xf32>
    %44 = tpu.matmul %41, %43, %cst_21 {dimension_numbers = #tpu.dot_dimension_numbers<[1], [0], [0], [1], [0, 0, 1, 1], [], []>} : vector<16x512xbf16>, vector<512x128xbf16>, vector<16x128xf32> -> vector<16x128xf32>
    %45 = arith.addf %40, %44 : vector<16x128xf32>
    %46 = vector.extract_strided_slice %35 {offsets = [1, 0], sizes = [16, 512], strides = [1, 1]} : vector<18x512xbf16> to vector<16x512xbf16>
    %c1_22 = arith.constant 1 : index
    %c0_23 = arith.constant 0 : index
    %c0_24 = arith.constant 0 : index
    %47 = vector.load %arg5[%c1_22, %c0_23, %c0_24] : memref<3x512x128xbf16, #tpu.memory_space<vmem>>, vector<1x512x128xbf16>
    %48 = vector.shape_cast %47 : vector<1x512x128xbf16> to vector<512x128xbf16>
    %cst_25 = arith.constant dense<0.000000e+00> : vector<16x128xf32>
    %49 = tpu.matmul %46, %48, %cst_25 {dimension_numbers = #tpu.dot_dimension_numbers<[1], [0], [0], [1], [0, 0, 1, 1], [], []>} : vector<16x512xbf16>, vector<512x128xbf16>, vector<16x128xf32> -> vector<16x128xf32>
    %50 = arith.addf %45, %49 : vector<16x128xf32>
    %51 = vector.extract_strided_slice %35 {offsets = [2, 0], sizes = [16, 512], strides = [1, 1]} : vector<18x512xbf16> to vector<16x512xbf16>
    %c2_26 = arith.constant 2 : index
    %c0_27 = arith.constant 0 : index
    %c0_28 = arith.constant 0 : index
    %52 = vector.load %arg5[%c2_26, %c0_27, %c0_28] : memref<3x512x128xbf16, #tpu.memory_space<vmem>>, vector<1x512x128xbf16>
    %53 = vector.shape_cast %52 : vector<1x512x128xbf16> to vector<512x128xbf16>
    %cst_29 = arith.constant dense<0.000000e+00> : vector<16x128xf32>
    %54 = tpu.matmul %51, %53, %cst_29 {dimension_numbers = #tpu.dot_dimension_numbers<[1], [0], [0], [1], [0, 0, 1, 1], [], []>} : vector<16x512xbf16>, vector<512x128xbf16>, vector<16x128xf32> -> vector<16x128xf32>
    %55 = arith.addf %50, %54 : vector<16x128xf32>
    %c0_30 = arith.constant 0 : index
    %c0_31 = arith.constant 0 : index
    %c0_32 = arith.constant 0 : index
    %56 = vector.load %arg7[%c0_30, %c0_31, %c0_32] : memref<1x16x128xf32, #tpu.memory_space<vmem>>, vector<1x16x128xf32>
    %57 = vector.shape_cast %56 : vector<1x16x128xf32> to vector<16x128xf32>
    %58 = vector.shape_cast %55 : vector<16x128xf32> to vector<1x16x128xf32>
    tpu.vector_store %arg7[%c0_30, %c0_31, %c0_32], %58 {strides = array<i32>} : memref<1x16x128xf32, #tpu.memory_space<vmem>>, vector<1x16x128xf32>,
    return
  }
  func.func @transform_0(%arg0: i32, %arg1: i32) -> (i32, i32, i32, i32) {
    %c0_i32 = arith.constant 0 : i32
    %c0_i32_0 = arith.constant 0 : i32
    %c0_i32_1 = arith.constant 0 : i32
    return %arg0, %arg1, %c0_i32, %c0_i32_0 : i32, i32, i32, i32
  }
  func.func @transform_1(%arg0: i32, %arg1: i32) -> (i32, i32, i32) {
    %c0_i32 = arith.constant 0 : i32
    %c0_i32_0 = arith.constant 0 : i32
    %c0_i32_1 = arith.constant 0 : i32
    %c0_i32_2 = arith.constant 0 : i32
    return %c0_i32, %c0_i32_0, %c0_i32_1 : i32, i32, i32
  }
  func.func @transform_2(%arg0: i32, %arg1: i32) -> (i32, i32) {
    %c0_i32 = arith.constant 0 : i32
    %c0_i32_0 = arith.constant 0 : i32
    %c0_i32_1 = arith.constant 0 : i32
    return %c0_i32, %c0_i32_0 : i32, i32
  }
  func.func @transform_3(%arg0: i32, %arg1: i32) -> (i32, i32, i32) {
    %c0_i32 = arith.constant 0 : i32
    %c0_i32_0 = arith.constant 0 : i32
    %c0_i32_1 = arith.constant 0 : i32
    %c0_i32_2 = arith.constant 0 : i32
    return %c0_i32, %c0_i32_0, %c0_i32_1 : i32, i32, i32
  }
  func.func @transform_4(%arg0: i32, %arg1: i32) -> (i32, i32) {
    %c0_i32 = arith.constant 0 : i32
    %c0_i32_0 = arith.constant 0 : i32
    %c0_i32_1 = arith.constant 0 : i32
    return %c0_i32, %c0_i32_0 : i32, i32
  }
  func.func @transform_5(%arg0: i32, %arg1: i32) -> (i32, i32, i32) {
    %c0_i32 = arith.constant 0 : i32
    %c0_i32_0 = arith.constant 0 : i32
    return %arg0, %arg1, %c0_i32 : i32, i32, i32
  }
}

</mosaic_0001>

<llo_original>
// kernel: tpu_custom_call.1
$region0: #{tpu_custom_call.1}
  #allocation0 [shape = 'u32[]', space=smem, size = 0x4, offset = 0x4, fixed_abs, tag = 'smem constant byte address 0x4 - core index']
  #allocation1 [shape = 'u32[144,128]{1,0:T(1,128)}', space=vmem, size = 0x12000, scoped, tag = 'internal scratch']
  %s0 = inlined_call_operand.vmem [shape: f32[2,1,20,128], index: 0, kind: input, shape index: {}]
  %s1 = inlined_call_operand.hbm [shape: bf16[3,128,512], index: 1, kind: input, shape index: {}]
  %s2 = inlined_call_operand.vmem [shape: f32[1,512], index: 2, kind: input, shape index: {}]
  %s3 = inlined_call_operand.hbm [shape: bf16[3,512,128], index: 3, kind: input, shape index: {}]
  %s4 = inlined_call_operand.vmem [shape: f32[1,128], index: 4, kind: input, shape index: {}]
  %s5 = inlined_call_operand.hbm [shape: f32[2,16,128], index: 5, kind: output, shape index: {}]
  %s6 = sld [smem:[#allocation0]]
  $region61: #{tpu_custom_call.1} parent=0
    _
  %s8 = ssub.s32 1, %s6
  %s9 = scalar_select 0, %s8, %s6
  $region1: #{tpu_custom_call.1} parent=0
    #allocation2 [shape = 'u8[393216]{0}', space=vmem, size = 0x60000, scoped, tag = 'input window, operand 1, single buffered']
    #allocation3 [shape = 's32[2]{0}', space=sflag, size = 0x8, scoped, tag = 'scoped memory for tpu_custom_call.1']
    #allocation4 [shape = 's32[2]{0}', space=sflag, size = 0x8, scoped, tag = 'scoped memory for tpu_custom_call.1']
    #allocation5 [shape = 'u8[393216]{0}', space=vmem, size = 0x60000, scoped, tag = 'input window, operand 3, single buffered']
    #allocation6 [shape = 's32[1]{0}', space=sflag, size = 0x4, scoped, tag = 'scoped memory for tpu_custom_call.1']
    #allocation7 [shape = 'u8[16384]{0}', space=vmem, size = 0x4000, scoped, tag = 'output window, operand 0']
    %10 = vsyncpa [#allocation3], 0
    %11 = vsyncpa [#allocation6], 0
    %12 = vsyncpa [#allocation4], 0
    %s13 = scalar_lea.sflag [#allocation4], 1
    %14 = vsyncpa %s13, 0
    loop: start=0, step=1, limit=4
    $region2: #{tpu_custom_call.1} parent=1 // loop_pre_header
      _
    $region3: #{tpu_custom_call.1} parent=1 // loop_header
      %s16 = sphi 0, %s20
      %p17 = scmp.ge.s32.totalorder %s16, 4
      %s23 = sphi 0, %s35
      %s24 = sphi 0, %s31
      %s25 = sphi 0, %s23
      %s26 = sphi 0, %s24
      %s27 = sphi 0, %s25
      %s28 = sphi 0, %s26
      %s40 = sphi 0, %s42
      %s43 = sphi 0, %s40
      %s44 = sphi 0, %s43
      %s60 = sphi 0, %s44
      %s64 = sphi 0, %s64
      %s66 = sphi 0, %s64
      %s67 = sphi 0, %s66
      %s81 = sphi 0, %s67
      %s85 = sphi 0, %s85
      %s87 = sphi 0, %s85
      %s88 = sphi 0, %s87
      %s102 = sphi 0, %s88
      %s106 = sphi 0, %s106
      %s108 = sphi 0, %s106
      %s109 = sphi 0, %s108
      %s123 = sphi 0, %s109
      %s127 = sphi 0, %s127
      %s129 = sphi 0, %s127
      %s130 = sphi 0, %s129
      %s144 = sphi 0, %s130
      %s152 = sphi 0, %s154
      %s155 = sphi 0, %s152
      %s156 = sphi 0, %s155
      %s172 = sphi 0, %s156
    $region4: #{tpu_custom_call.1} parent=1 // loop_header_branch
      %19 = sbr.rel (%p17) target = $region8
    $region5: #{tpu_custom_call.1} parent=1 // loop_body
      %s21 = ssub.s32 %s16, 1
      %s22 = ssub.s32 %s16, 2
      %s29 = sadd.s32 1, %s24
      %p30 = scmp.ge.s32.totalorder %s29, 1
      %s31 = scalar_select %p30, 0, %s29
      %s32 = sadd.s32 1, %s23
      %s33 = scalar_select %p30, %s32, %s23
      %p34 = scmp.ge.s32.totalorder %s33, 2
      %s35 = scalar_select %p34, 0, %s33
      %s36 = ssub.s32 %s23, %s35
      %s37 = ssub.s32 %s24, %s31
      %s38 = sor.u32 %s36, %s37
      %p39 = scmp.eq.s32.totalorder %s38, 0
      %s41 = sadd.s32 %s40, 1
      %s42 = scalar_select %p39, %s40, %s41
      %p45 = pneg %p39
      %p46 = scmp.eq.s32.totalorder %s16, 1
      %p47 = por %p45, %p46
      %p48 = scmp.ne.s32.totalorder %s40, %s43
      %p49 = scmp.eq.s32.totalorder %s16, 0
      %p50 = por %p48, %p49
      %p51 = scmp.ne.s32.totalorder %s40, %s43
      %p52 = scmp.eq.s32.totalorder %s21, 1
      %p53 = por %p51, %p52
      %p54 = scmp.ne.s32.totalorder %s43, %s44
      %p55 = scmp.eq.s32.totalorder %s21, 0
      %p56 = por %p54, %p55
      %p57 = scmp.ne.s32.totalorder %s43, %s44
      %p58 = scmp.eq.s32.totalorder %s22, 1
      %p59 = por %p57, %p58
      %p61 = scmp.ne.s32.totalorder %s44, %s60
      %p62 = scmp.eq.s32.totalorder %s22, 0
      %p63 = por %p61, %p62
      %s65 = sadd.s32 %s64, 1
      %p68 = scmp.eq.s32.totalorder %s16, 1
      %p69 = scmp.ne.s32.totalorder %s64, %s66
      %p70 = scmp.eq.s32.totalorder %s16, 0
      %p71 = por %p69, %p70
      %p72 = scmp.ne.s32.totalorder %s64, %s66
      %p73 = scmp.eq.s32.totalorder %s21, 1
      %p74 = por %p72, %p73
      %p75 = scmp.ne.s32.totalorder %s66, %s67
      %p76 = scmp.eq.s32.totalorder %s21, 0
      %p77 = por %p75, %p76
      %p78 = scmp.ne.s32.totalorder %s66, %s67
      %p79 = scmp.eq.s32.totalorder %s22, 1
      %p80 = por %p78, %p79
      %p82 = scmp.ne.s32.totalorder %s67, %s81
      %p83 = scmp.eq.s32.totalorder %s22, 0
      %p84 = por %p82, %p83
      %s86 = sadd.s32 %s85, 1
      %p89 = scmp.eq.s32.totalorder %s16, 1
      %p90 = scmp.ne.s32.totalorder %s85, %s87
      %p91 = scmp.eq.s32.totalorder %s16, 0
      %p92 = por %p90, %p91
      %p93 = scmp.ne.s32.totalorder %s85, %s87
      %p94 = scmp.eq.s32.totalorder %s21, 1
      %p95 = por %p93, %p94
      %p96 = scmp.ne.s32.totalorder %s87, %s88
      %p97 = scmp.eq.s32.totalorder %s21, 0
      %p98 = por %p96, %p97
      %p99 = scmp.ne.s32.totalorder %s87, %s88
      %p100 = scmp.eq.s32.totalorder %s22, 1
      %p101 = por %p99, %p100
      %p103 = scmp.ne.s32.totalorder %s88, %s102
      %p104 = scmp.eq.s32.totalorder %s22, 0
      %p105 = por %p103, %p104
      %s107 = sadd.s32 %s106, 1
      %p110 = scmp.eq.s32.totalorder %s16, 1
      %p111 = scmp.ne.s32.totalorder %s106, %s108
      %p112 = scmp.eq.s32.totalorder %s16, 0
      %p113 = por %p111, %p112
      %p114 = scmp.ne.s32.totalorder %s106, %s108
      %p115 = scmp.eq.s32.totalorder %s21, 1
      %p116 = por %p114, %p115
      %p117 = scmp.ne.s32.totalorder %s108, %s109
      %p118 = scmp.eq.s32.totalorder %s21, 0
      %p119 = por %p117, %p118
      %p120 = scmp.ne.s32.totalorder %s108, %s109
      %p121 = scmp.eq.s32.totalorder %s22, 1
      %p122 = por %p120, %p121
      %p124 = scmp.ne.s32.totalorder %s109, %s123
      %p125 = scmp.eq.s32.totalorder %s22, 0
      %p126 = por %p124, %p125
      %s128 = sadd.s32 %s127, 1
      %p131 = scmp.eq.s32.totalorder %s16, 1
      %p132 = scmp.ne.s32.totalorder %s127, %s129
      %p133 = scmp.eq.s32.totalorder %s16, 0
      %p134 = por %p132, %p133
      %p135 = scmp.ne.s32.totalorder %s127, %s129
      %p136 = scmp.eq.s32.totalorder %s21, 1
      %p137 = por %p135, %p136
      %p138 = scmp.ne.s32.totalorder %s129, %s130
      %p139 = scmp.eq.s32.totalorder %s21, 0
      %p140 = por %p138, %p139
      %p141 = scmp.ne.s32.totalorder %s129, %s130
      %p142 = scmp.eq.s32.totalorder %s22, 1
      %p143 = por %p141, %p142
      %p145 = scmp.ne.s32.totalorder %s130, %s144
      %p146 = scmp.eq.s32.totalorder %s22, 0
      %p147 = por %p145, %p146
      %s148 = ssub.s32 %s23, %s35
      %s149 = ssub.s32 %s24, %s31
      %s150 = sor.u32 %s148, %s149
      %p151 = scmp.eq.s32.totalorder %s150, 0
      %s153 = sadd.s32 %s152, 1
      %s154 = scalar_select %p151, %s152, %s153
      %p157 = pneg %p151
      %p158 = scmp.eq.s32.totalorder %s16, 1
      %p159 = por %p157, %p158
      %p160 = scmp.ne.s32.totalorder %s152, %s155
      %p161 = scmp.eq.s32.totalorder %s16, 0
      %p162 = por %p160, %p161
      %p163 = scmp.ne.s32.totalorder %s152, %s155
      %p164 = scmp.eq.s32.totalorder %s21, 1
      %p165 = por %p163, %p164
      %p166 = scmp.ne.s32.totalorder %s155, %s156
      %p167 = scmp.eq.s32.totalorder %s21, 0
      %p168 = por %p166, %p167
      %p169 = scmp.ne.s32.totalorder %s155, %s156
      %p170 = scmp.eq.s32.totalorder %s22, 1
      %p171 = por %p169, %p170
      %p173 = scmp.ne.s32.totalorder %s156, %s172
      %p174 = scmp.eq.s32.totalorder %s22, 0
      %p175 = por %p173, %p174
      %p176 = scmp.le.s32.totalorder 1, %s16
      %p177 = scmp.lt.s32.totalorder %s16, 3
      %p178 = pnand %p176, %p177
      %p179 = pneg %p178
      // Predicated region
      $region9: #{tpu_custom_call.1} parent=5 // pred_check
        _
      $region10: #{tpu_custom_call.1} parent=5 // pred_check_branch
        %181 = sbr.rel (%p178) target = $region12
      $region11: #{tpu_custom_call.1} parent=5 // pred_region
        %s182 = ssub.s32 %s16, 1
        // Predicated region
        $region13: #{tpu_custom_call.1} parent=11 // pred_check
          %p183 = pneg %p77
        $region14: #{tpu_custom_call.1} parent=11 // pred_check_branch
          %185 = sbr.rel (%p183) target = $region16
        $region15: #{tpu_custom_call.1} parent=11 // pred_region
          %s187 = ssub.s32 12288, 12288
          %188 = vsyncadd [#allocation3], %s187
          %s189 = sshll.u32 [#allocation2], 4
          %s190 = int_to_ptr.vmem [resolvable:$true] %s189
          %195 = dma.hbm_to_vmem [thread:$0]  %s1, 12288, %s190, [#allocation3], 256, 256, 16
        $region16: #{tpu_custom_call.1} parent=11 // pred_fallthru
          _
        // Predicated region
        $region17: #{tpu_custom_call.1} parent=11 // pred_check
          %p196 = pneg %p98
        $region18: #{tpu_custom_call.1} parent=11 // pred_check_branch
          %198 = sbr.rel (%p196) target = $region20
        $region19: #{tpu_custom_call.1} parent=11 // pred_region
          _
        $region20: #{tpu_custom_call.1} parent=11 // pred_fallthru
          _
        // Predicated region
        $region21: #{tpu_custom_call.1} parent=11 // pred_check
          %p199 = pneg %p119
        $region22: #{tpu_custom_call.1} parent=11 // pred_check_branch
          %201 = sbr.rel (%p199) target = $region24
        $region23: #{tpu_custom_call.1} parent=11 // pred_region
          %s203 = ssub.s32 12288, 12288
          %204 = vsyncadd [#allocation6], %s203
          %s205 = sshll.u32 [#allocation5], 4
          %s206 = int_to_ptr.vmem [resolvable:$true] %s205
          %211 = dma.hbm_to_vmem [thread:$0]  %s3, 12288, %s206, [#allocation6], 64, 64, 4
        $region24: #{tpu_custom_call.1} parent=11 // pred_fallthru
          _
        // Predicated region
        $region25: #{tpu_custom_call.1} parent=11 // pred_check
          %p212 = pneg %p140
        $region26: #{tpu_custom_call.1} parent=11 // pred_check_branch
          %214 = sbr.rel (%p212) target = $region28
        $region27: #{tpu_custom_call.1} parent=11 // pred_region
          _
        $region28: #{tpu_custom_call.1} parent=11 // pred_fallthru
          _
      $region12: #{tpu_custom_call.1} parent=5 // pred_fallthru
        _
      %p215 = scmp.lt.s32.totalorder %s16, 2
      // Predicated region
      $region29: #{tpu_custom_call.1} parent=5 // pred_check
        %p216 = pneg %p215
      $region30: #{tpu_custom_call.1} parent=5 // pred_check_branch
        %218 = sbr.rel (%p216) target = $region32
      $region31: #{tpu_custom_call.1} parent=5 // pred_region
        // Predicated region
        $region33: #{tpu_custom_call.1} parent=31 // pred_check
          %p219 = pneg %p50
        $region34: #{tpu_custom_call.1} parent=31 // pred_check_branch
          %221 = sbr.rel (%p219) target = $region36
        $region35: #{tpu_custom_call.1} parent=31 // pred_region
          %p222 = scmp.lt.s32.totalorder %s23, 1
          %s223 = scalar_select %p222, %s23, 1
          %p224 = scmp.lt.s32.totalorder %s24, 0
          %s225 = scalar_select %p224, %s24, 0
          %s226 = smul.addr %s225, 3
          %s227 = smul.addr %s223, 3
          %s228 = sadd.s32 %s226, %s227
          %s229 = smul.addr %s228, 8
          %s230 = scalar_lea.vmem %s0, %s229
        $region36: #{tpu_custom_call.1} parent=31 // pred_fallthru
          _
      $region32: #{tpu_custom_call.1} parent=5 // pred_fallthru
        _
      %p231 = scmp.le.s32.totalorder 1, %s16
      %p232 = scmp.lt.s32.totalorder %s16, 3
      %p233 = pnand %p231, %p232
      %p234 = pneg %p233
      // Predicated region
      $region37: #{tpu_custom_call.1} parent=5 // pred_check
        _
      $region38: #{tpu_custom_call.1} parent=5 // pred_check_branch
        %236 = sbr.rel (%p233) target = $region40
      $region39: #{tpu_custom_call.1} parent=5 // pred_region
        %s237 = ssub.s32 %s16, 1
        // Predicated region
        $region41: #{tpu_custom_call.1} parent=39 // pred_check
          %p238 = pneg %p77
        $region42: #{tpu_custom_call.1} parent=39 // pred_check_branch
          %240 = sbr.rel (%p238) target = $region44
        $region43: #{tpu_custom_call.1} parent=39 // pred_region
          %241 = dma.done [#allocation3], 12288
        $region44: #{tpu_custom_call.1} parent=39 // pred_fallthru
          _
        // Predicated region
        $region45: #{tpu_custom_call.1} parent=39 // pred_check
          %p242 = pneg %p119
        $region46: #{tpu_custom_call.1} parent=39 // pred_check_branch
          %244 = sbr.rel (%p242) target = $region48
        $region47: #{tpu_custom_call.1} parent=39 // pred_region
          %245 = dma.done [#allocation6], 12288
        $region48: #{tpu_custom_call.1} parent=39 // pred_fallthru
          _
        %p246 = scmp.lt.s32.totalorder %s25, 1
        %s247 = scalar_select %p246, %s25, 1
        %p248 = scmp.lt.s32.totalorder %s26, 0
        %s249 = scalar_select %p248, %s26, 0
        %s250 = smul.addr %s249, 3
        %s251 = smul.addr %s247, 3
        %s252 = sadd.s32 %s250, %s251
        %s253 = smul.addr %s252, 8
        %s254 = scalar_lea.vmem %s0, %s253
        %p255 = pneg %p56
        %p256 = pneg %p53
        %p257 = pneg %p77
        %p258 = pneg %p74
        %p259 = pneg %p98
        %p260 = pneg %p95
        %p261 = pneg %p119
        %p262 = pneg %p116
        %p263 = pneg %p140
        %p264 = pneg %p137
        %p265 = pneg %p168
        %p266 = pneg %p165
        %s267 = sand.u32 %s155, 1
        %s268 = scalar_lea.sflag [#allocation4], %s267
        %s269 = sand.u32 %s155, 1
        %s270 = smul.addr %s269, 16
        %s271 = scalar_lea.vmem [#allocation7], %s270
        %p272 = scmp.lt.s32.totalorder %s25, 1
        %s273 = scalar_select %p272, %s25, 1
        %p274 = scmp.lt.s32.totalorder %s26, 0
        %s275 = scalar_select %p274, %s26, 0
        %s276 = smul.addr %s275, 3
        %s277 = smul.addr %s273, 3
        %s278 = sadd.s32 %s276, %s277
        %s279 = smul.addr %s278, 8
        %s280 = scalar_lea.vmem %s0, %s279
        %s281 = smul.u32 2, %s26
        %v283 = vld [vmem:[%s280] sm:$0xff]
        %v284 = vld [vmem:[%s280 + $0x8] sm:$0xff]
        %v285 = vld [vmem:[%s280 + $0x10] sm:$0xf]
        %v286 = vpack.c.bf16 %v284, %v283
        %v287 = vpack.c.bf16 %v285, %v285
        %v288 = vld [vmem:[%s2] sm:$0xf]
        %v290 = vlaneseq
        %v291 = vshrl.u32 %v290, 7
        %v292 = vsub.s32 0, %v291
        %v293 = vrot.slane %v288, %v292
        %v294 = vlaneseq
        %v295 = vshrl.u32 %v294, 7
        %v296 = vsub.s32 1, %v295
        %v297 = vrot.slane %v288, %v296
        %v298 = vlaneseq
        %v299 = vshrl.u32 %v298, 7
        %v300 = vsub.s32 2, %v299
        %v301 = vrot.slane %v288, %v300
        %v302 = vlaneseq
        %v303 = vshrl.u32 %v302, 7
        %v304 = vsub.s32 3, %v303
        %v305 = vrot.slane %v288, %v304
        %v310 = vld [vmem:[#allocation2] sm:$0xff]
        %v311 = vld [vmem:[#allocation2 + $0x8] sm:$0xff]
        %v312 = vld [vmem:[#allocation2 + $0x10] sm:$0xff]
        %v313 = vld [vmem:[#allocation2 + $0x18] sm:$0xff]
        %v314 = vld [vmem:[#allocation2 + $0x20] sm:$0xff]
        %v315 = vld [vmem:[#allocation2 + $0x28] sm:$0xff]
        %v316 = vld [vmem:[#allocation2 + $0x30] sm:$0xff]
        %v317 = vld [vmem:[#allocation2 + $0x38] sm:$0xff]
        %v318 = vld [vmem:[#allocation2 + $0x40] sm:$0xff]
        %v319 = vld [vmem:[#allocation2 + $0x48] sm:$0xff]
        %v320 = vld [vmem:[#allocation2 + $0x50] sm:$0xff]
        %v321 = vld [vmem:[#allocation2 + $0x58] sm:$0xff]
        %v322 = vld [vmem:[#allocation2 + $0x60] sm:$0xff]
        %v323 = vld [vmem:[#allocation2 + $0x68] sm:$0xff]
        %v324 = vld [vmem:[#allocation2 + $0x70] sm:$0xff]
        %v325 = vld [vmem:[#allocation2 + $0x78] sm:$0xff]
        %v326 = vld [vmem:[#allocation2 + $0x80] sm:$0xff]
        %v327 = vld [vmem:[#allocation2 + $0x88] sm:$0xff]
        %v328 = vld [vmem:[#allocation2 + $0x90] sm:$0xff]
        %v329 = vld [vmem:[#allocation2 + $0x98] sm:$0xff]
        %v330 = vld [vmem:[#allocation2 + $0xa0] sm:$0xff]
        %v331 = vld [vmem:[#allocation2 + $0xa8] sm:$0xff]
        %v332 = vld [vmem:[#allocation2 + $0xb0] sm:$0xff]
        %v333 = vld [vmem:[#allocation2 + $0xb8] sm:$0xff]
        %v334 = vld [vmem:[#allocation2 + $0xc0] sm:$0xff]
        %v335 = vld [vmem:[#allocation2 + $0xc8] sm:$0xff]
        %v336 = vld [vmem:[#allocation2 + $0xd0] sm:$0xff]
        %v337 = vld [vmem:[#allocation2 + $0xd8] sm:$0xff]
        %v338 = vld [vmem:[#allocation2 + $0xe0] sm:$0xff]
        %v339 = vld [vmem:[#allocation2 + $0xe8] sm:$0xff]
        %v340 = vld [vmem:[#allocation2 + $0xf0] sm:$0xff]
        %v341 = vld [vmem:[#allocation2 + $0xf8] sm:$0xff]
        %v374 = vunpack.c.l.b16 %v310
        %v375 = vunpack.c.h.b16 %v310
        %v376 = vunpack.c.l.b16 %v311
        %v377 = vunpack.c.h.b16 %v311
        %v378 = vunpack.c.l.b16 %v312
        %v379 = vunpack.c.h.b16 %v312
        %v380 = vunpack.c.l.b16 %v313
        %v381 = vunpack.c.h.b16 %v313
        %v382 = vunpack.c.l.b16 %v314
        %v383 = vunpack.c.h.b16 %v314
        %v384 = vunpack.c.l.b16 %v315
        %v385 = vunpack.c.h.b16 %v315
        %v386 = vunpack.c.l.b16 %v316
        %v387 = vunpack.c.h.b16 %v316
        %v388 = vunpack.c.l.b16 %v317
        %v389 = vunpack.c.h.b16 %v317
        %v390 = vunpack.c.l.b16 %v318
        %v391 = vunpack.c.h.b16 %v318
        %v392 = vunpack.c.l.b16 %v319
        %v393 = vunpack.c.h.b16 %v319
        %v394 = vunpack.c.l.b16 %v320
        %v395 = vunpack.c.h.b16 %v320
        %v396 = vunpack.c.l.b16 %v321
        %v397 = vunpack.c.h.b16 %v321
        %v398 = vunpack.c.l.b16 %v322
        %v399 = vunpack.c.h.b16 %v322
        %v400 = vunpack.c.l.b16 %v323
        %v401 = vunpack.c.h.b16 %v323
        %v402 = vunpack.c.l.b16 %v324
        %v403 = vunpack.c.h.b16 %v324
        %v404 = vunpack.c.l.b16 %v325
        %v405 = vunpack.c.h.b16 %v325
        %v406 = vunpack.c.l.b16 %v326
        %v407 = vunpack.c.h.b16 %v326
        %v408 = vunpack.c.l.b16 %v327
        %v409 = vunpack.c.h.b16 %v327
        %v410 = vunpack.c.l.b16 %v328
        %v411 = vunpack.c.h.b16 %v328
        %v412 = vunpack.c.l.b16 %v329
        %v413 = vunpack.c.h.b16 %v329
        %v414 = vunpack.c.l.b16 %v330
        %v415 = vunpack.c.h.b16 %v330
        %v416 = vunpack.c.l.b16 %v331
        %v417 = vunpack.c.h.b16 %v331
        %v418 = vunpack.c.l.b16 %v332
        %v419 = vunpack.c.h.b16 %v332
        %v420 = vunpack.c.l.b16 %v333
        %v421 = vunpack.c.h.b16 %v333
        %v422 = vunpack.c.l.b16 %v334
        %v423 = vunpack.c.h.b16 %v334
        %v424 = vunpack.c.l.b16 %v335
        %v425 = vunpack.c.h.b16 %v335
        %v426 = vunpack.c.l.b16 %v336
        %v427 = vunpack.c.h.b16 %v336
        %v428 = vunpack.c.l.b16 %v337
        %v429 = vunpack.c.h.b16 %v337
        %v430 = vunpack.c.l.b16 %v338
        %v431 = vunpack.c.h.b16 %v338
        %v432 = vunpack.c.l.b16 %v339
        %v433 = vunpack.c.h.b16 %v339
        %v434 = vunpack.c.l.b16 %v340
        %v435 = vunpack.c.h.b16 %v340
        %v436 = vunpack.c.l.b16 %v341
        %v437 = vunpack.c.h.b16 %v341
        %v438 = vpack.c.b16 %v378, %v374
        %v439 = vpack.c.b16 %v379, %v375
        %v440 = vpack.c.b16 %v380, %v376
        %v441 = vpack.c.b16 %v381, %v377
        %v442 = vpack.c.b16 %v386, %v382
        %v443 = vpack.c.b16 %v387, %v383
        %v444 = vpack.c.b16 %v388, %v384
        %v445 = vpack.c.b16 %v389, %v385
        %v446 = vpack.c.b16 %v394, %v390
        %v447 = vpack.c.b16 %v395, %v391
        %v448 = vpack.c.b16 %v396, %v392
        %v449 = vpack.c.b16 %v397, %v393
        %v450 = vpack.c.b16 %v402, %v398
        %v451 = vpack.c.b16 %v403, %v399
        %v452 = vpack.c.b16 %v404, %v400
        %v453 = vpack.c.b16 %v405, %v401
        %v454 = vpack.c.b16 %v410, %v406
        %v455 = vpack.c.b16 %v411, %v407
        %v456 = vpack.c.b16 %v412, %v408
        %v457 = vpack.c.b16 %v413, %v409
        %v458 = vpack.c.b16 %v418, %v414
        %v459 = vpack.c.b16 %v419, %v415
        %v460 = vpack.c.b16 %v420, %v416
        %v461 = vpack.c.b16 %v421, %v417
        %v462 = vpack.c.b16 %v426, %v422
        %v463 = vpack.c.b16 %v427, %v423
        %v464 = vpack.c.b16 %v428, %v424
        %v465 = vpack.c.b16 %v429, %v425
        %v466 = vpack.c.b16 %v434, %v430
        %v467 = vpack.c.b16 %v435, %v431
        %v468 = vpack.c.b16 %v436, %v432
        %v469 = vpack.c.b16 %v437, %v433
        %502 = vmatprep.subr.bf16.mxu0 %v439
        %503 = vmatpush1.bf16.msra.mxu0 %v438
        %504 = vmatprep.subr.bf16.mxu0 %v443
        %505 = vmatpush1.bf16.msra.mxu0 %v442
        %506 = vmatprep.subr.bf16.mxu0 %v447
        %507 = vmatpush1.bf16.msra.mxu0 %v446
        %508 = vmatprep.subr.bf16.mxu0 %v451
        %509 = vmatpush1.bf16.msra.mxu0 %v450
        %510 = vmatprep.subr.bf16.mxu0 %v455
        %511 = vmatpush1.bf16.msra.mxu0 %v454
        %512 = vmatprep.subr.bf16.mxu0 %v459
        %513 = vmatpush1.bf16.msra.mxu0 %v458
        %514 = vmatprep.subr.bf16.mxu0 %v463
        %515 = vmatpush1.bf16.msra.mxu0 %v462
        %516 = vmatprep.subr.bf16.mxu0 %v467
        %517 = vmatpush1.bf16.msra.mxu0 %v466
        %518 = vmatprep.subr.bf16.mxu0 0
        %519 = vmatpush1.bf16.msra.mxu0 0
        %520 = vmatprep.subr.bf16.mxu0 0
        %521 = vmatpush1.bf16.msra.mxu0 0
        %522 = vmatprep.subr.bf16.mxu0 0
        %523 = vmatpush1.bf16.msra.mxu0 0
        %524 = vmatprep.subr.bf16.mxu0 0
        %525 = vmatpush1.bf16.msra.mxu0 0
        %526 = vmatprep.subr.bf16.mxu0 0
        %527 = vmatpush1.bf16.msra.mxu0 0
        %528 = vmatprep.subr.bf16.mxu0 0
        %529 = vmatpush1.bf16.msra.mxu0 0
        %530 = vmatprep.subr.bf16.mxu0 0
        %531 = vmatpush1.bf16.msra.mxu0 0
        %532 = vmatprep.subr.bf16.mxu0 0
        %533 = vmatpush1.bf16.msra.mxu0 0
        %534 = vmatprep.mubr.bf16.mxu0 0
        %535 = vmatmul.mubr.bf16.gmra.mrb[0].mxu0 %v286
        %v536 = vpop.f32.mrb[0].mxu0
        %v537 = vadd.f32 0.0, %v536
        %v538 = vpop.f32.mrb[0].mxu0
        %v539 = vadd.f32 0.0, %v538
        %v540 = vpop.f32.mrb[0].mxu0
        %v541 = vadd.f32 0.0, %v540
        %v542 = vpop.f32.mrb[0].mxu0
        %v543 = vadd.f32 0.0, %v542
        %544 = vmatprep.mubr.bf16.mxu0 0
        %545 = vmatmul.mubr.bf16.gmra.mrb[0].mxu0 %v287
        %v546 = vpop.f32.mrb[0].mxu0
        %v547 = vadd.f32 0.0, %v546
        %v548 = vpop.f32.mrb[0].mxu0
        %v549 = vadd.f32 0.0, %v548
        %v550 = vpop.f32.mrb[0].mxu0
        %v551 = vpop.f32.mrb[0].mxu0
        %552 = vdwg.mxu0
        %553 = vmatprep.subr.bf16.mxu0 %v441
        %554 = vmatpush1.bf16.msra.mxu0 %v440
        %555 = vmatprep.subr.bf16.mxu0 %v445
        %556 = vmatpush1.bf16.msra.mxu0 %v444
        %557 = vmatprep.subr.bf16.mxu0 %v449
        %558 = vmatpush1.bf16.msra.mxu0 %v448
        %559 = vmatprep.subr.bf16.mxu0 %v453
        %560 = vmatpush1.bf16.msra.mxu0 %v452
        %561 = vmatprep.subr.bf16.mxu0 %v457
        %562 = vmatpush1.bf16.msra.mxu0 %v456
        %563 = vmatprep.subr.bf16.mxu0 %v461
        %564 = vmatpush1.bf16.msra.mxu0 %v460
        %565 = vmatprep.subr.bf16.mxu0 %v465
        %566 = vmatpush1.bf16.msra.mxu0 %v464
        %567 = vmatprep.subr.bf16.mxu0 %v469
        %568 = vmatpush1.bf16.msra.mxu0 %v468
        %569 = vmatprep.subr.bf16.mxu0 0
        %570 = vmatpush1.bf16.msra.mxu0 0
        %571 = vmatprep.subr.bf16.mxu0 0
        %572 = vmatpush1.bf16.msra.mxu0 0
        %573 = vmatprep.subr.bf16.mxu0 0
        %574 = vmatpush1.bf16.msra.mxu0 0
        %575 = vmatprep.subr.bf16.mxu0 0
        %576 = vmatpush1.bf16.msra.mxu0 0
        %577 = vmatprep.subr.bf16.mxu0 0
        %578 = vmatpush1.bf16.msra.mxu0 0
        %579 = vmatprep.subr.bf16.mxu0 0
        %580 = vmatpush1.bf16.msra.mxu0 0
        %581 = vmatprep.subr.bf16.mxu0 0
        %582 = vmatpush1.bf16.msra.mxu0 0
        %583 = vmatprep.subr.bf16.mxu0 0
        %584 = vmatpush1.bf16.msra.mxu0 0
        %585 = vmatprep.mubr.bf16.mxu0 0
        %586 = vmatmul.mubr.bf16.gmra.mrb[0].mxu0 %v286
        %v587 = vpop.f32.mrb[0].mxu0
        %v588 = vadd.f32 0.0, %v587
        %v589 = vpop.f32.mrb[0].mxu0
        %v590 = vadd.f32 0.0, %v589
        %v591 = vpop.f32.mrb[0].mxu0
        %v592 = vadd.f32 0.0, %v591
        %v593 = vpop.f32.mrb[0].mxu0
        %v594 = vadd.f32 0.0, %v593
        %595 = vmatprep.mubr.bf16.mxu0 0
        %596 = vmatmul.mubr.bf16.gmra.mrb[0].mxu0 %v287
        %v597 = vpop.f32.mrb[0].mxu0
        %v598 = vadd.f32 0.0, %v597
        %v599 = vpop.f32.mrb[0].mxu0
        %v600 = vadd.f32 0.0, %v599
        %v601 = vpop.f32.mrb[0].mxu0
        %v602 = vpop.f32.mrb[0].mxu0
        %603 = vdwg.mxu0
        %v604 = vadd.f32 %v293, %v537
        %v605 = vadd.f32 %v297, %v539
        %v606 = vadd.f32 %v301, %v588
        %v607 = vadd.f32 %v305, %v590
        %v608 = vadd.f32 %v293, %v541
        %v609 = vadd.f32 %v297, %v543
        %v610 = vadd.f32 %v301, %v592
        %v611 = vadd.f32 %v305, %v594
        %v612 = vadd.f32 %v293, %v547
        %v613 = vadd.f32 %v297, %v549
        %v614 = vadd.f32 %v301, %v598
        %v615 = vadd.f32 %v305, %v600
        %s616 = scalar_lea.vmem [#allocation2], 256
        %v617 = vld [vmem:[%s616] sm:$0xff]
        %v618 = vld [vmem:[%s616 + $0x8] sm:$0xff]
        %v619 = vld [vmem:[%s616 + $0x10] sm:$0xff]
        %v620 = vld [vmem:[%s616 + $0x18] sm:$0xff]
        %v621 = vld [vmem:[%s616 + $0x20] sm:$0xff]
        %v622 = vld [vmem:[%s616 + $0x28] sm:$0xff]
        %v623 = vld [vmem:[%s616 + $0x30] sm:$0xff]
        %v624 = vld [vmem:[%s616 + $0x38] sm:$0xff]
        %v625 = vld [vmem:[%s616 + $0x40] sm:$0xff]
        %v626 = vld [vmem:[%s616 + $0x48] sm:$0xff]
        %v627 = vld [vmem:[%s616 + $0x50] sm:$0xff]
        %v628 = vld [vmem:[%s616 + $0x58] sm:$0xff]
        %v629 = vld [vmem:[%s616 + $0x60] sm:$0xff]
        %v630 = vld [vmem:[%s616 + $0x68] sm:$0xff]
        %v631 = vld [vmem:[%s616 + $0x70] sm:$0xff]
        %v632 = vld [vmem:[%s616 + $0x78] sm:$0xff]
        %v633 = vld [vmem:[%s616 + $0x80] sm:$0xff]
        %v634 = vld [vmem:[%s616 + $0x88] sm:$0xff]
        %v635 = vld [vmem:[%s616 + $0x90] sm:$0xff]
        %v636 = vld [vmem:[%s616 + $0x98] sm:$0xff]
        %v637 = vld [vmem:[%s616 + $0xa0] sm:$0xff]
        %v638 = vld [vmem:[%s616 + $0xa8] sm:$0xff]
        %v639 = vld [vmem:[%s616 + $0xb0] sm:$0xff]
        %v640 = vld [vmem:[%s616 + $0xb8] sm:$0xff]
        %v641 = vld [vmem:[%s616 + $0xc0] sm:$0xff]
        %v642 = vld [vmem:[%s616 + $0xc8] sm:$0xff]
        %v643 = vld [vmem:[%s616 + $0xd0] sm:$0xff]
        %v644 = vld [vmem:[%s616 + $0xd8] sm:$0xff]
        %v645 = vld [vmem:[%s616 + $0xe0] sm:$0xff]
        %v646 = vld [vmem:[%s616 + $0xe8] sm:$0xff]
        %v647 = vld [vmem:[%s616 + $0xf0] sm:$0xff]
        %v648 = vld [vmem:[%s616 + $0xf8] sm:$0xff]
        %vm649 = vsmask.f32 7424
        %v651 = vshrl.u32 %v286, 16
        %v653 = vshll.u32 %v286, 16
        %v655 = vrot.slane %v653, 1
        %v656 = vor.u32 %v651, %v655
        %v658 = vshll.u32 %v287, 16
        %v660 = vrot.slane %v658, 1
        %v661 = vsel %vm649, %v656, %v660
        %v662 = vshrl.u32 %v287, 16
        %v664 = vor.u32 %v662, %v660
        %v699 = vunpack.c.l.b16 %v617
        %v700 = vunpack.c.h.b16 %v617
        %v701 = vunpack.c.l.b16 %v618
        %v702 = vunpack.c.h.b16 %v618
        %v703 = vunpack.c.l.b16 %v619
        %v704 = vunpack.c.h.b16 %v619
        %v705 = vunpack.c.l.b16 %v620
        %v706 = vunpack.c.h.b16 %v620
        %v707 = vunpack.c.l.b16 %v621
        %v708 = vunpack.c.h.b16 %v621
        %v709 = vunpack.c.l.b16 %v622
        %v710 = vunpack.c.h.b16 %v622
        %v711 = vunpack.c.l.b16 %v623
        %v712 = vunpack.c.h.b16 %v623
        %v713 = vunpack.c.l.b16 %v624
        %v714 = vunpack.c.h.b16 %v624
        %v715 = vunpack.c.l.b16 %v625
        %v716 = vunpack.c.h.b16 %v625
        %v717 = vunpack.c.l.b16 %v626
        %v718 = vunpack.c.h.b16 %v626
        %v719 = vunpack.c.l.b16 %v627
        %v720 = vunpack.c.h.b16 %v627
        %v721 = vunpack.c.l.b16 %v628
        %v722 = vunpack.c.h.b16 %v628
        %v723 = vunpack.c.l.b16 %v629
        %v724 = vunpack.c.h.b16 %v629
        %v725 = vunpack.c.l.b16 %v630
        %v726 = vunpack.c.h.b16 %v630
        %v727 = vunpack.c.l.b16 %v631
        %v728 = vunpack.c.h.b16 %v631
        %v729 = vunpack.c.l.b16 %v632
        %v730 = vunpack.c.h.b16 %v632
        %v731 = vunpack.c.l.b16 %v633
        %v732 = vunpack.c.h.b16 %v633
        %v733 = vunpack.c.l.b16 %v634
        %v734 = vunpack.c.h.b16 %v634
        %v735 = vunpack.c.l.b16 %v635
        %v736 = vunpack.c.h.b16 %v635
        %v737 = vunpack.c.l.b16 %v636
        %v738 = vunpack.c.h.b16 %v636
        %v739 = vunpack.c.l.b16 %v637
        %v740 = vunpack.c.h.b16 %v637
        %v741 = vunpack.c.l.b16 %v638
        %v742 = vunpack.c.h.b16 %v638
        %v743 = vunpack.c.l.b16 %v639
        %v744 = vunpack.c.h.b16 %v639
        %v745 = vunpack.c.l.b16 %v640
        %v746 = vunpack.c.h.b16 %v640
        %v747 = vunpack.c.l.b16 %v641
        %v748 = vunpack.c.h.b16 %v641
        %v749 = vunpack.c.l.b16 %v642
        %v750 = vunpack.c.h.b16 %v642
        %v751 = vunpack.c.l.b16 %v643
        %v752 = vunpack.c.h.b16 %v643
        %v753 = vunpack.c.l.b16 %v644
        %v754 = vunpack.c.h.b16 %v644
        %v755 = vunpack.c.l.b16 %v645
        %v756 = vunpack.c.h.b16 %v645
        %v757 = vunpack.c.l.b16 %v646
        %v758 = vunpack.c.h.b16 %v646
        %v759 = vunpack.c.l.b16 %v647
        %v760 = vunpack.c.h.b16 %v647
        %v761 = vunpack.c.l.b16 %v648
        %v762 = vunpack.c.h.b16 %v648
        %v763 = vpack.c.b16 %v703, %v699
        %v764 = vpack.c.b16 %v704, %v700
        %v765 = vpack.c.b16 %v705, %v701
        %v766 = vpack.c.b16 %v706, %v702
        %v767 = vpack.c.b16 %v711, %v707
        %v768 = vpack.c.b16 %v712, %v708
        %v769 = vpack.c.b16 %v713, %v709
        %v770 = vpack.c.b16 %v714, %v710
        %v771 = vpack.c.b16 %v719, %v715
        %v772 = vpack.c.b16 %v720, %v716
        %v773 = vpack.c.b16 %v721, %v717
        %v774 = vpack.c.b16 %v722, %v718
        %v775 = vpack.c.b16 %v727, %v723
        %v776 = vpack.c.b16 %v728, %v724
        %v777 = vpack.c.b16 %v729, %v725
        %v778 = vpack.c.b16 %v730, %v726
        %v779 = vpack.c.b16 %v735, %v731
        %v780 = vpack.c.b16 %v736, %v732
        %v781 = vpack.c.b16 %v737, %v733
        %v782 = vpack.c.b16 %v738, %v734
        %v783 = vpack.c.b16 %v743, %v739
        %v784 = vpack.c.b16 %v744, %v740
        %v785 = vpack.c.b16 %v745, %v741
        %v786 = vpack.c.b16 %v746, %v742
        %v787 = vpack.c.b16 %v751, %v747
        %v788 = vpack.c.b16 %v752, %v748
        %v789 = vpack.c.b16 %v753, %v749
        %v790 = vpack.c.b16 %v754, %v750
        %v791 = vpack.c.b16 %v759, %v755
        %v792 = vpack.c.b16 %v760, %v756
        %v793 = vpack.c.b16 %v761, %v757
        %v794 = vpack.c.b16 %v762, %v758
        %827 = vmatprep.subr.bf16.mxu0 %v764
        %828 = vmatpush1.bf16.msra.mxu0 %v763
        %829 = vmatprep.subr.bf16.mxu0 %v768
        %830 = vmatpush1.bf16.msra.mxu0 %v767
        %831 = vmatprep.subr.bf16.mxu0 %v772
        %832 = vmatpush1.bf16.msra.mxu0 %v771
        %833 = vmatprep.subr.bf16.mxu0 %v776
        %834 = vmatpush1.bf16.msra.mxu0 %v775
        %835 = vmatprep.subr.bf16.mxu0 %v780
        %836 = vmatpush1.bf16.msra.mxu0 %v779
        %837 = vmatprep.subr.bf16.mxu0 %v784
        %838 = vmatpush1.bf16.msra.mxu0 %v783
        %839 = vmatprep.subr.bf16.mxu0 %v788
        %840 = vmatpush1.bf16.msra.mxu0 %v787
        %841 = vmatprep.subr.bf16.mxu0 %v792
        %842 = vmatpush1.bf16.msra.mxu0 %v791
        %843 = vmatprep.subr.bf16.mxu0 0
        %844 = vmatpush1.bf16.msra.mxu0 0
        %845 = vmatprep.subr.bf16.mxu0 0
        %846 = vmatpush1.bf16.msra.mxu0 0
        %847 = vmatprep.subr.bf16.mxu0 0
        %848 = vmatpush1.bf16.msra.mxu0 0
        %849 = vmatprep.subr.bf16.mxu0 0
        %850 = vmatpush1.bf16.msra.mxu0 0
        %851 = vmatprep.subr.bf16.mxu0 0
        %852 = vmatpush1.bf16.msra.mxu0 0
        %853 = vmatprep.subr.bf16.mxu0 0
        %854 = vmatpush1.bf16.msra.mxu0 0
        %855 = vmatprep.subr.bf16.mxu0 0
        %856 = vmatpush1.bf16.msra.mxu0 0
        %857 = vmatprep.subr.bf16.mxu0 0
        %858 = vmatpush1.bf16.msra.mxu0 0
        %859 = vmatprep.mubr.bf16.mxu0 0
        %860 = vmatmul.mubr.bf16.gmra.mrb[0].mxu0 %v661
        %v861 = vpop.f32.mrb[0].mxu0
        %v862 = vadd.f32 0.0, %v861
        %v863 = vpop.f32.mrb[0].mxu0
        %v864 = vadd.f32 0.0, %v863
        %v865 = vpop.f32.mrb[0].mxu0
        %v866 = vadd.f32 0.0, %v865
        %v867 = vpop.f32.mrb[0].mxu0
        %v868 = vadd.f32 0.0, %v867
        %869 = vmatprep.mubr.bf16.mxu0 0
        %870 = vmatmul.mubr.bf16.gmra.mrb[0].mxu0 %v664
        %v871 = vpop.f32.mrb[0].mxu0
        %v872 = vadd.f32 0.0, %v871
        %v873 = vpop.f32.mrb[0].mxu0
        %v874 = vadd.f32 0.0, %v873
        %v875 = vpop.f32.mrb[0].mxu0
        %v876 = vpop.f32.mrb[0].mxu0
        %877 = vdwg.mxu0
        %878 = vmatprep.subr.bf16.mxu0 %v766
        %879 = vmatpush1.bf16.msra.mxu0 %v765
        %880 = vmatprep.subr.bf16.mxu0 %v770
        %881 = vmatpush1.bf16.msra.mxu0 %v769
        %882 = vmatprep.subr.bf16.mxu0 %v774
        %883 = vmatpush1.bf16.msra.mxu0 %v773
        %884 = vmatprep.subr.bf16.mxu0 %v778
        %885 = vmatpush1.bf16.msra.mxu0 %v777
        %886 = vmatprep.subr.bf16.mxu0 %v782
        %887 = vmatpush1.bf16.msra.mxu0 %v781
        %888 = vmatprep.subr.bf16.mxu0 %v786
        %889 = vmatpush1.bf16.msra.mxu0 %v785
        %890 = vmatprep.subr.bf16.mxu0 %v790
        %891 = vmatpush1.bf16.msra.mxu0 %v789
        %892 = vmatprep.subr.bf16.mxu0 %v794
        %893 = vmatpush1.bf16.msra.mxu0 %v793
        %894 = vmatprep.subr.bf16.mxu0 0
        %895 = vmatpush1.bf16.msra.mxu0 0
        %896 = vmatprep.subr.bf16.mxu0 0
        %897 = vmatpush1.bf16.msra.mxu0 0
        %898 = vmatprep.subr.bf16.mxu0 0
        %899 = vmatpush1.bf16.msra.mxu0 0
        %900 = vmatprep.subr.bf16.mxu0 0
        %901 = vmatpush1.bf16.msra.mxu0 0
        %902 = vmatprep.subr.bf16.mxu0 0
        %903 = vmatpush1.bf16.msra.mxu0 0
        %904 = vmatprep.subr.bf16.mxu0 0
        %905 = vmatpush1.bf16.msra.mxu0 0
        %906 = vmatprep.subr.bf16.mxu0 0
        %907 = vmatpush1.bf16.msra.mxu0 0
        %908 = vmatprep.subr.bf16.mxu0 0
        %909 = vmatpush1.bf16.msra.mxu0 0
        %910 = vmatprep.mubr.bf16.mxu0 0
        %911 = vmatmul.mubr.bf16.gmra.mrb[0].mxu0 %v661
        %v912 = vpop.f32.mrb[0].mxu0
        %v913 = vadd.f32 0.0, %v912
        %v914 = vpop.f32.mrb[0].mxu0
        %v915 = vadd.f32 0.0, %v914
        %v916 = vpop.f32.mrb[0].mxu0
        %v917 = vadd.f32 0.0, %v916
        %v918 = vpop.f32.mrb[0].mxu0
        %v919 = vadd.f32 0.0, %v918
        %920 = vmatprep.mubr.bf16.mxu0 0
        %921 = vmatmul.mubr.bf16.gmra.mrb[0].mxu0 %v664
        %v922 = vpop.f32.mrb[0].mxu0
        %v923 = vadd.f32 0.0, %v922
        %v924 = vpop.f32.mrb[0].mxu0
        %v925 = vadd.f32 0.0, %v924
        %v926 = vpop.f32.mrb[0].mxu0
        %v927 = vpop.f32.mrb[0].mxu0
        %928 = vdwg.mxu0
        %v929 = vadd.f32 %v604, %v862
        %v930 = vadd.f32 %v605, %v864
        %v931 = vadd.f32 %v606, %v913
        %v932 = vadd.f32 %v607, %v915
        %v933 = vadd.f32 %v608, %v866
        %v934 = vadd.f32 %v609, %v868
        %v935 = vadd.f32 %v610, %v917
        %v936 = vadd.f32 %v611, %v919
        %v937 = vadd.f32 %v612, %v872
        %v938 = vadd.f32 %v613, %v874
        %v939 = vadd.f32 %v614, %v923
        %v940 = vadd.f32 %v615, %v925
        %s941 = scalar_lea.vmem [#allocation2], 512
        %v942 = vld [vmem:[%s941] sm:$0xff]
        %v943 = vld [vmem:[%s941 + $0x8] sm:$0xff]
        %v944 = vld [vmem:[%s941 + $0x10] sm:$0xff]
        %v945 = vld [vmem:[%s941 + $0x18] sm:$0xff]
        %v946 = vld [vmem:[%s941 + $0x20] sm:$0xff]
        %v947 = vld [vmem:[%s941 + $0x28] sm:$0xff]
        %v948 = vld [vmem:[%s941 + $0x30] sm:$0xff]
        %v949 = vld [vmem:[%s941 + $0x38] sm:$0xff]
        %v950 = vld [vmem:[%s941 + $0x40] sm:$0xff]
        %v951 = vld [vmem:[%s941 + $0x48] sm:$0xff]
        %v952 = vld [vmem:[%s941 + $0x50] sm:$0xff]
        %v953 = vld [vmem:[%s941 + $0x58] sm:$0xff]
        %v954 = vld [vmem:[%s941 + $0x60] sm:$0xff]
        %v955 = vld [vmem:[%s941 + $0x68] sm:$0xff]
        %v956 = vld [vmem:[%s941 + $0x70] sm:$0xff]
        %v957 = vld [vmem:[%s941 + $0x78] sm:$0xff]
        %v958 = vld [vmem:[%s941 + $0x80] sm:$0xff]
        %v959 = vld [vmem:[%s941 + $0x88] sm:$0xff]
        %v960 = vld [vmem:[%s941 + $0x90] sm:$0xff]
        %v961 = vld [vmem:[%s941 + $0x98] sm:$0xff]
        %v962 = vld [vmem:[%s941 + $0xa0] sm:$0xff]
        %v963 = vld [vmem:[%s941 + $0xa8] sm:$0xff]
        %v964 = vld [vmem:[%s941 + $0xb0] sm:$0xff]
        %v965 = vld [vmem:[%s941 + $0xb8] sm:$0xff]
        %v966 = vld [vmem:[%s941 + $0xc0] sm:$0xff]
        %v967 = vld [vmem:[%s941 + $0xc8] sm:$0xff]
        %v968 = vld [vmem:[%s941 + $0xd0] sm:$0xff]
        %v969 = vld [vmem:[%s941 + $0xd8] sm:$0xff]
        %v970 = vld [vmem:[%s941 + $0xe0] sm:$0xff]
        %v971 = vld [vmem:[%s941 + $0xe8] sm:$0xff]
        %v972 = vld [vmem:[%s941 + $0xf0] sm:$0xff]
        %v973 = vld [vmem:[%s941 + $0xf8] sm:$0xff]
        %vm976 = vcmask 1046528
        %v977 = vrot.slane %v286, 1
        %v978 = vrot.slane %v287, 1
        %v979 = vsel %vm976, %v977, %v978
        %v1014 = vunpack.c.l.b16 %v942
        %v1015 = vunpack.c.h.b16 %v942
        %v1016 = vunpack.c.l.b16 %v943
        %v1017 = vunpack.c.h.b16 %v943
        %v1018 = vunpack.c.l.b16 %v944
        %v1019 = vunpack.c.h.b16 %v944
        %v1020 = vunpack.c.l.b16 %v945
        %v1021 = vunpack.c.h.b16 %v945
        %v1022 = vunpack.c.l.b16 %v946
        %v1023 = vunpack.c.h.b16 %v946
        %v1024 = vunpack.c.l.b16 %v947
        %v1025 = vunpack.c.h.b16 %v947
        %v1026 = vunpack.c.l.b16 %v948
        %v1027 = vunpack.c.h.b16 %v948
        %v1028 = vunpack.c.l.b16 %v949
        %v1029 = vunpack.c.h.b16 %v949
        %v1030 = vunpack.c.l.b16 %v950
        %v1031 = vunpack.c.h.b16 %v950
        %v1032 = vunpack.c.l.b16 %v951
        %v1033 = vunpack.c.h.b16 %v951
        %v1034 = vunpack.c.l.b16 %v952
        %v1035 = vunpack.c.h.b16 %v952
        %v1036 = vunpack.c.l.b16 %v953
        %v1037 = vunpack.c.h.b16 %v953
        %v1038 = vunpack.c.l.b16 %v954
        %v1039 = vunpack.c.h.b16 %v954
        %v1040 = vunpack.c.l.b16 %v955
        %v1041 = vunpack.c.h.b16 %v955
        %v1042 = vunpack.c.l.b16 %v956
        %v1043 = vunpack.c.h.b16 %v956
        %v1044 = vunpack.c.l.b16 %v957
        %v1045 = vunpack.c.h.b16 %v957
        %v1046 = vunpack.c.l.b16 %v958
        %v1047 = vunpack.c.h.b16 %v958
        %v1048 = vunpack.c.l.b16 %v959
        %v1049 = vunpack.c.h.b16 %v959
        %v1050 = vunpack.c.l.b16 %v960
        %v1051 = vunpack.c.h.b16 %v960
        %v1052 = vunpack.c.l.b16 %v961
        %v1053 = vunpack.c.h.b16 %v961
        %v1054 = vunpack.c.l.b16 %v962
        %v1055 = vunpack.c.h.b16 %v962
        %v1056 = vunpack.c.l.b16 %v963
        %v1057 = vunpack.c.h.b16 %v963
        %v1058 = vunpack.c.l.b16 %v964
        %v1059 = vunpack.c.h.b16 %v964
        %v1060 = vunpack.c.l.b16 %v965
        %v1061 = vunpack.c.h.b16 %v965
        %v1062 = vunpack.c.l.b16 %v966
        %v1063 = vunpack.c.h.b16 %v966
        %v1064 = vunpack.c.l.b16 %v967
        %v1065 = vunpack.c.h.b16 %v967
        %v1066 = vunpack.c.l.b16 %v968
        %v1067 = vunpack.c.h.b16 %v968
        %v1068 = vunpack.c.l.b16 %v969
        %v1069 = vunpack.c.h.b16 %v969
        %v1070 = vunpack.c.l.b16 %v970
        %v1071 = vunpack.c.h.b16 %v970
        %v1072 = vunpack.c.l.b16 %v971
        %v1073 = vunpack.c.h.b16 %v971
        %v1074 = vunpack.c.l.b16 %v972
        %v1075 = vunpack.c.h.b16 %v972
        %v1076 = vunpack.c.l.b16 %v973
        %v1077 = vunpack.c.h.b16 %v973
        %v1078 = vpack.c.b16 %v1018, %v1014
        %v1079 = vpack.c.b16 %v1019, %v1015
        %v1080 = vpack.c.b16 %v1020, %v1016
        %v1081 = vpack.c.b16 %v1021, %v1017
        %v1082 = vpack.c.b16 %v1026, %v1022
        %v1083 = vpack.c.b16 %v1027, %v1023
        %v1084 = vpack.c.b16 %v1028, %v1024
        %v1085 = vpack.c.b16 %v1029, %v1025
        %v1086 = vpack.c.b16 %v1034, %v1030
        %v1087 = vpack.c.b16 %v1035, %v1031
        %v1088 = vpack.c.b16 %v1036, %v1032
        %v1089 = vpack.c.b16 %v1037, %v1033
        %v1090 = vpack.c.b16 %v1042, %v1038
        %v1091 = vpack.c.b16 %v1043, %v1039
        %v1092 = vpack.c.b16 %v1044, %v1040
        %v1093 = vpack.c.b16 %v1045, %v1041
        %v1094 = vpack.c.b16 %v1050, %v1046
        %v1095 = vpack.c.b16 %v1051, %v1047
        %v1096 = vpack.c.b16 %v1052, %v1048
        %v1097 = vpack.c.b16 %v1053, %v1049
        %v1098 = vpack.c.b16 %v1058, %v1054
        %v1099 = vpack.c.b16 %v1059, %v1055
        %v1100 = vpack.c.b16 %v1060, %v1056
        %v1101 = vpack.c.b16 %v1061, %v1057
        %v1102 = vpack.c.b16 %v1066, %v1062
        %v1103 = vpack.c.b16 %v1067, %v1063
        %v1104 = vpack.c.b16 %v1068, %v1064
        %v1105 = vpack.c.b16 %v1069, %v1065
        %v1106 = vpack.c.b16 %v1074, %v1070
        %v1107 = vpack.c.b16 %v1075, %v1071
        %v1108 = vpack.c.b16 %v1076, %v1072
        %v1109 = vpack.c.b16 %v1077, %v1073
        %1142 = vmatprep.subr.bf16.mxu0 %v1079
        %1143 = vmatpush1.bf16.msra.mxu0 %v1078
        %1144 = vmatprep.subr.bf16.mxu0 %v1083
        %1145 = vmatpush1.bf16.msra.mxu0 %v1082
        %1146 = vmatprep.subr.bf16.mxu0 %v1087
        %1147 = vmatpush1.bf16.msra.mxu0 %v1086
        %1148 = vmatprep.subr.bf16.mxu0 %v1091
        %1149 = vmatpush1.bf16.msra.mxu0 %v1090
        %1150 = vmatprep.subr.bf16.mxu0 %v1095
        %1151 = vmatpush1.bf16.msra.mxu0 %v1094
        %1152 = vmatprep.subr.bf16.mxu0 %v1099
        %1153 = vmatpush1.bf16.msra.mxu0 %v1098
        %1154 = vmatprep.subr.bf16.mxu0 %v1103
        %1155 = vmatpush1.bf16.msra.mxu0 %v1102
        %1156 = vmatprep.subr.bf16.mxu0 %v1107
        %1157 = vmatpush1.bf16.msra.mxu0 %v1106
        %1158 = vmatprep.subr.bf16.mxu0 0
        %1159 = vmatpush1.bf16.msra.mxu0 0
        %1160 = vmatprep.subr.bf16.mxu0 0
        %1161 = vmatpush1.bf16.msra.mxu0 0
        %1162 = vmatprep.subr.bf16.mxu0 0
        %1163 = vmatpush1.bf16.msra.mxu0 0
        %1164 = vmatprep.subr.bf16.mxu0 0
        %1165 = vmatpush1.bf16.msra.mxu0 0
        %1166 = vmatprep.subr.bf16.mxu0 0
        %1167 = vmatpush1.bf16.msra.mxu0 0
        %1168 = vmatprep.subr.bf16.mxu0 0
        %1169 = vmatpush1.bf16.msra.mxu0 0
        %1170 = vmatprep.subr.bf16.mxu0 0
        %1171 = vmatpush1.bf16.msra.mxu0 0
        %1172 = vmatprep.subr.bf16.mxu0 0
        %1173 = vmatpush1.bf16.msra.mxu0 0
        %1174 = vmatprep.mubr.bf16.mxu0 0
        %1175 = vmatmul.mubr.bf16.gmra.mrb[0].mxu0 %v979
        %v1176 = vpop.f32.mrb[0].mxu0
        %v1177 = vadd.f32 0.0, %v1176
        %v1178 = vpop.f32.mrb[0].mxu0
        %v1179 = vadd.f32 0.0, %v1178
        %v1180 = vpop.f32.mrb[0].mxu0
        %v1181 = vadd.f32 0.0, %v1180
        %v1182 = vpop.f32.mrb[0].mxu0
        %v1183 = vadd.f32 0.0, %v1182
        %1184 = vmatprep.mubr.bf16.mxu0 0
        %1185 = vmatmul.mubr.bf16.gmra.mrb[0].mxu0 %v978
        %v1186 = vpop.f32.mrb[0].mxu0
        %v1187 = vadd.f32 0.0, %v1186
        %v1188 = vpop.f32.mrb[0].mxu0
        %v1189 = vadd.f32 0.0, %v1188
        %v1190 = vpop.f32.mrb[0].mxu0
        %v1191 = vpop.f32.mrb[0].mxu0
        %1192 = vdwg.mxu0
        %1193 = vmatprep.subr.bf16.mxu0 %v1081
        %1194 = vmatpush1.bf16.msra.mxu0 %v1080
        %1195 = vmatprep.subr.bf16.mxu0 %v1085
        %1196 = vmatpush1.bf16.msra.mxu0 %v1084
        %1197 = vmatprep.subr.bf16.mxu0 %v1089
        %1198 = vmatpush1.bf16.msra.mxu0 %v1088
        %1199 = vmatprep.subr.bf16.mxu0 %v1093
        %1200 = vmatpush1.bf16.msra.mxu0 %v1092
        %1201 = vmatprep.subr.bf16.mxu0 %v1097
        %1202 = vmatpush1.bf16.msra.mxu0 %v1096
        %1203 = vmatprep.subr.bf16.mxu0 %v1101
        %1204 = vmatpush1.bf16.msra.mxu0 %v1100
        %1205 = vmatprep.subr.bf16.mxu0 %v1105
        %1206 = vmatpush1.bf16.msra.mxu0 %v1104
        %1207 = vmatprep.subr.bf16.mxu0 %v1109
        %1208 = vmatpush1.bf16.msra.mxu0 %v1108
        %1209 = vmatprep.subr.bf16.mxu0 0
        %1210 = vmatpush1.bf16.msra.mxu0 0
        %1211 = vmatprep.subr.bf16.mxu0 0
        %1212 = vmatpush1.bf16.msra.mxu0 0
        %1213 = vmatprep.subr.bf16.mxu0 0
        %1214 = vmatpush1.bf16.msra.mxu0 0
        %1215 = vmatprep.subr.bf16.mxu0 0
        %1216 = vmatpush1.bf16.msra.mxu0 0
        %1217 = vmatprep.subr.bf16.mxu0 0
        %1218 = vmatpush1.bf16.msra.mxu0 0
        %1219 = vmatprep.subr.bf16.mxu0 0
        %1220 = vmatpush1.bf16.msra.mxu0 0
        %1221 = vmatprep.subr.bf16.mxu0 0
        %1222 = vmatpush1.bf16.msra.mxu0 0
        %1223 = vmatprep.subr.bf16.mxu0 0
        %1224 = vmatpush1.bf16.msra.mxu0 0
        %1225 = vmatprep.mubr.bf16.mxu0 0
        %1226 = vmatmul.mubr.bf16.gmra.mrb[0].mxu0 %v979
        %v1227 = vpop.f32.mrb[0].mxu0
        %v1228 = vadd.f32 0.0, %v1227
        %v1229 = vpop.f32.mrb[0].mxu0
        %v1230 = vadd.f32 0.0, %v1229
        %v1231 = vpop.f32.mrb[0].mxu0
        %v1232 = vadd.f32 0.0, %v1231
        %v1233 = vpop.f32.mrb[0].mxu0
        %v1234 = vadd.f32 0.0, %v1233
        %1235 = vmatprep.mubr.bf16.mxu0 0
        %1236 = vmatmul.mubr.bf16.gmra.mrb[0].mxu0 %v978
        %v1237 = vpop.f32.mrb[0].mxu0
        %v1238 = vadd.f32 0.0, %v1237
        %v1239 = vpop.f32.mrb[0].mxu0
        %v1240 = vadd.f32 0.0, %v1239
        %v1241 = vpop.f32.mrb[0].mxu0
        %v1242 = vpop.f32.mrb[0].mxu0
        %1243 = vdwg.mxu0
        %v1244 = vadd.f32 %v929, %v1177
        %v1245 = vadd.f32 %v930, %v1179
        %v1246 = vadd.f32 %v931, %v1228
        %v1247 = vadd.f32 %v932, %v1230
        %v1248 = vadd.f32 %v933, %v1181
        %v1249 = vadd.f32 %v934, %v1183
        %v1250 = vadd.f32 %v935, %v1232
        %v1251 = vadd.f32 %v936, %v1234
        %v1252 = vadd.f32 %v937, %v1187
        %v1253 = vadd.f32 %v938, %v1189
        %v1254 = vadd.f32 %v939, %v1238
        %v1255 = vadd.f32 %v940, %v1240
        %s1256 = smul.u32 %s26, 16
        %s1257 = ssub.s32 %s1256, 1
        %v1258 = vlaneseq
        %v1259 = vshrl.u32 %v1258, 7
        %v1260 = vadd.s32 %v1259, 8
        %v1261 = vadd.s32 %v1259, 16
        %v1262 = vstv %s1257
        %v1263 = vadd.s32 %v1262, %v1259
        %v1264 = vadd.s32 %v1262, %v1260
        %v1265 = vadd.s32 %v1262, %v1261
        %vm1266 = vcmp.ge.s32.totalorder %v1263, 0
        %vm1267 = vcmp.ge.s32.totalorder %v1264, 0
        %vm1268 = vcmp.ge.s32.totalorder %v1265, 0
        %vm1269 = vcmp.lt.s32.totalorder %v1263, 16
        %vm1270 = vcmp.lt.s32.totalorder %v1264, 16
        %vm1271 = vcmp.lt.s32.totalorder %v1265, 16
        %vm1272 = vmand %vm1266, %vm1269
        %vm1273 = vmand %vm1267, %vm1270
        %vm1274 = vmand %vm1268, %vm1271
        %v1275 = vsel %vm1272, 1, 0
        %v1276 = vsel %vm1273, 1, 0
        %v1277 = vsel %vm1274, 1, 0
        %vm1278 = vcmp.eq.s32.totalorder %v1275, 1
        %vm1279 = vcmp.eq.s32.totalorder %v1276, 1
        %vm1280 = vcmp.eq.s32.totalorder %v1277, 1
        %v1281 = vsel %vm1278, %v1244, 0.0
        %v1282 = vsel %vm1278, %v1245, 0.0
        %v1283 = vsel %vm1278, %v1246, 0.0
        %v1284 = vsel %vm1278, %v1247, 0.0
        %v1285 = vsel %vm1279, %v1248, 0.0
        %v1286 = vsel %vm1279, %v1249, 0.0
        %v1287 = vsel %vm1279, %v1250, 0.0
        %v1288 = vsel %vm1279, %v1251, 0.0
        %v1289 = vsel %vm1280, %v1252, 0.0
        %v1290 = vsel %vm1280, %v1253, 0.0
        %v1291 = vsel %vm1280, %v1254, 0.0
        %v1292 = vsel %vm1280, %v1255, 0.0
        %v1293 = vpack.c.bf16 %v1285, %v1281
        %v1294 = vpack.c.bf16 %v1286, %v1282
        %v1295 = vpack.c.bf16 %v1287, %v1283
        %v1296 = vpack.c.bf16 %v1288, %v1284
        %v1297 = vpack.c.bf16 %v1289, %v1289
        %v1298 = vpack.c.bf16 %v1290, %v1290
        %v1299 = vpack.c.bf16 %v1291, %v1291
        %v1300 = vpack.c.bf16 %v1292, %v1292
        %v1301 = vld [vmem:[%s4] sm:$0x1]
        %v1303 = vlaneseq
        %v1304 = vshrl.u32 %v1303, 7
        %v1305 = vsub.s32 0, %v1304
        %v1306 = vrot.slane %v1301, %v1305
        %v1308 = vadd.f32 %v283, %v1306
        %v1309 = vadd.f32 %v284, %v1306
        %v1310 = vadd.f32 %v285, %v1306
        %v1311 = vld [vmem:[#allocation5] sm:$0xf]
        %v1312 = vld [vmem:[#allocation5 + $0x4] sm:$0xf]
        %v1313 = vld [vmem:[#allocation5 + $0x8] sm:$0xf]
        %v1314 = vld [vmem:[#allocation5 + $0xc] sm:$0xf]
        %v1315 = vld [vmem:[#allocation5 + $0x10] sm:$0xf]
        %v1316 = vld [vmem:[#allocation5 + $0x14] sm:$0xf]
        %v1317 = vld [vmem:[#allocation5 + $0x18] sm:$0xf]
        %v1318 = vld [vmem:[#allocation5 + $0x1c] sm:$0xf]
        %v1319 = vld [vmem:[#allocation5 + $0x20] sm:$0xf]
        %v1320 = vld [vmem:[#allocation5 + $0x24] sm:$0xf]
        %v1321 = vld [vmem:[#allocation5 + $0x28] sm:$0xf]
        %v1322 = vld [vmem:[#allocation5 + $0x2c] sm:$0xf]
        %v1323 = vld [vmem:[#allocation5 + $0x30] sm:$0xf]
        %v1324 = vld [vmem:[#allocation5 + $0x34] sm:$0xf]
        %v1325 = vld [vmem:[#allocation5 + $0x38] sm:$0xf]
        %v1326 = vld [vmem:[#allocation5 + $0x3c] sm:$0xf]
        %v1327 = vld [vmem:[#allocation5 + $0x40] sm:$0xf]
        %v1328 = vld [vmem:[#allocation5 + $0x44] sm:$0xf]
        %v1329 = vld [vmem:[#allocation5 + $0x48] sm:$0xf]
        %v1330 = vld [vmem:[#allocation5 + $0x4c] sm:$0xf]
        %v1331 = vld [vmem:[#allocation5 + $0x50] sm:$0xf]
        %v1332 = vld [vmem:[#allocation5 + $0x54] sm:$0xf]
        %v1333 = vld [vmem:[#allocation5 + $0x58] sm:$0xf]
        %v1334 = vld [vmem:[#allocation5 + $0x5c] sm:$0xf]
        %v1335 = vld [vmem:[#allocation5 + $0x60] sm:$0xf]
        %v1336 = vld [vmem:[#allocation5 + $0x64] sm:$0xf]
        %v1337 = vld [vmem:[#allocation5 + $0x68] sm:$0xf]
        %v1338 = vld [vmem:[#allocation5 + $0x6c] sm:$0xf]
        %v1339 = vld [vmem:[#allocation5 + $0x70] sm:$0xf]
        %v1340 = vld [vmem:[#allocation5 + $0x74] sm:$0xf]
        %v1341 = vld [vmem:[#allocation5 + $0x78] sm:$0xf]
        %v1342 = vld [vmem:[#allocation5 + $0x7c] sm:$0xf]
        %v1343 = vld [vmem:[#allocation5 + $0x80] sm:$0xf]
        %v1344 = vld [vmem:[#allocation5 + $0x84] sm:$0xf]
        %v1345 = vld [vmem:[#allocation5 + $0x88] sm:$0xf]
        %v1346 = vld [vmem:[#allocation5 + $0x8c] sm:$0xf]
        %v1347 = vld [vmem:[#allocation5 + $0x90] sm:$0xf]
        %v1348 = vld [vmem:[#allocation5 + $0x94] sm:$0xf]
        %v1349 = vld [vmem:[#allocation5 + $0x98] sm:$0xf]
        %v1350 = vld [vmem:[#allocation5 + $0x9c] sm:$0xf]
        %v1351 = vld [vmem:[#allocation5 + $0xa0] sm:$0xf]
        %v1352 = vld [vmem:[#allocation5 + $0xa4] sm:$0xf]
        %v1353 = vld [vmem:[#allocation5 + $0xa8] sm:$0xf]
        %v1354 = vld [vmem:[#allocation5 + $0xac] sm:$0xf]
        %v1355 = vld [vmem:[#allocation5 + $0xb0] sm:$0xf]
        %v1356 = vld [vmem:[#allocation5 + $0xb4] sm:$0xf]
        %v1357 = vld [vmem:[#allocation5 + $0xb8] sm:$0xf]
        %v1358 = vld [vmem:[#allocation5 + $0xbc] sm:$0xf]
        %v1359 = vld [vmem:[#allocation5 + $0xc0] sm:$0xf]
        %v1360 = vld [vmem:[#allocation5 + $0xc4] sm:$0xf]
        %v1361 = vld [vmem:[#allocation5 + $0xc8] sm:$0xf]
        %v1362 = vld [vmem:[#allocation5 + $0xcc] sm:$0xf]
        %v1363 = vld [vmem:[#allocation5 + $0xd0] sm:$0xf]
        %v1364 = vld [vmem:[#allocation5 + $0xd4] sm:$0xf]
        %v1365 = vld [vmem:[#allocation5 + $0xd8] sm:$0xf]
        %v1366 = vld [vmem:[#allocation5 + $0xdc] sm:$0xf]
        %v1367 = vld [vmem:[#allocation5 + $0xe0] sm:$0xf]
        %v1368 = vld [vmem:[#allocation5 + $0xe4] sm:$0xf]
        %v1369 = vld [vmem:[#allocation5 + $0xe8] sm:$0xf]
        %v1370 = vld [vmem:[#allocation5 + $0xec] sm:$0xf]
        %v1371 = vld [vmem:[#allocation5 + $0xf0] sm:$0xf]
        %v1372 = vld [vmem:[#allocation5 + $0xf4] sm:$0xf]
        %v1373 = vld [vmem:[#allocation5 + $0xf8] sm:$0xf]
        %v1374 = vld [vmem:[#allocation5 + $0xfc] sm:$0xf]
        %v1439 = vunpack.c.l.b16 %v1311
        %v1440 = vunpack.c.l.b16 %v1312
        %v1441 = vunpack.c.l.b16 %v1313
        %v1442 = vunpack.c.l.b16 %v1314
        %v1443 = vunpack.c.l.b16 %v1315
        %v1444 = vunpack.c.l.b16 %v1316
        %v1445 = vunpack.c.l.b16 %v1317
        %v1446 = vunpack.c.l.b16 %v1318
        %v1447 = vunpack.c.l.b16 %v1319
        %v1448 = vunpack.c.l.b16 %v1320
        %v1449 = vunpack.c.l.b16 %v1321
        %v1450 = vunpack.c.l.b16 %v1322
        %v1451 = vunpack.c.l.b16 %v1323
        %v1452 = vunpack.c.l.b16 %v1324
        %v1453 = vunpack.c.l.b16 %v1325
        %v1454 = vunpack.c.l.b16 %v1326
        %v1455 = vunpack.c.l.b16 %v1327
        %v1456 = vunpack.c.l.b16 %v1328
        %v1457 = vunpack.c.l.b16 %v1329
        %v1458 = vunpack.c.l.b16 %v1330
        %v1459 = vunpack.c.l.b16 %v1331
        %v1460 = vunpack.c.l.b16 %v1332
        %v1461 = vunpack.c.l.b16 %v1333
        %v1462 = vunpack.c.l.b16 %v1334
        %v1463 = vunpack.c.l.b16 %v1335
        %v1464 = vunpack.c.l.b16 %v1336
        %v1465 = vunpack.c.l.b16 %v1337
        %v1466 = vunpack.c.l.b16 %v1338
        %v1467 = vunpack.c.l.b16 %v1339
        %v1468 = vunpack.c.l.b16 %v1340
        %v1469 = vunpack.c.l.b16 %v1341
        %v1470 = vunpack.c.l.b16 %v1342
        %v1471 = vunpack.c.l.b16 %v1343
        %v1472 = vunpack.c.l.b16 %v1344
        %v1473 = vunpack.c.l.b16 %v1345
        %v1474 = vunpack.c.l.b16 %v1346
        %v1475 = vunpack.c.l.b16 %v1347
        %v1476 = vunpack.c.l.b16 %v1348
        %v1477 = vunpack.c.l.b16 %v1349
        %v1478 = vunpack.c.l.b16 %v1350
        %v1479 = vunpack.c.l.b16 %v1351
        %v1480 = vunpack.c.l.b16 %v1352
        %v1481 = vunpack.c.l.b16 %v1353
        %v1482 = vunpack.c.l.b16 %v1354
        %v1483 = vunpack.c.l.b16 %v1355
        %v1484 = vunpack.c.l.b16 %v1356
        %v1485 = vunpack.c.l.b16 %v1357
        %v1486 = vunpack.c.l.b16 %v1358
        %v1487 = vunpack.c.l.b16 %v1359
        %v1488 = vunpack.c.l.b16 %v1360
        %v1489 = vunpack.c.l.b16 %v1361
        %v1490 = vunpack.c.l.b16 %v1362
        %v1491 = vunpack.c.l.b16 %v1363
        %v1492 = vunpack.c.l.b16 %v1364
        %v1493 = vunpack.c.l.b16 %v1365
        %v1494 = vunpack.c.l.b16 %v1366
        %v1495 = vunpack.c.l.b16 %v1367
        %v1496 = vunpack.c.l.b16 %v1368
        %v1497 = vunpack.c.l.b16 %v1369
        %v1498 = vunpack.c.l.b16 %v1370
        %v1499 = vunpack.c.l.b16 %v1371
        %v1500 = vunpack.c.l.b16 %v1372
        %v1501 = vunpack.c.l.b16 %v1373
        %v1502 = vunpack.c.l.b16 %v1374
        %v1503 = vpack.c.b16 %v1440, %v1439
        %v1504 = vpack.c.b16 %v1442, %v1441
        %v1505 = vpack.c.b16 %v1444, %v1443
        %v1506 = vpack.c.b16 %v1446, %v1445
        %v1507 = vpack.c.b16 %v1448, %v1447
        %v1508 = vpack.c.b16 %v1450, %v1449
        %v1509 = vpack.c.b16 %v1452, %v1451
        %v1510 = vpack.c.b16 %v1454, %v1453
        %v1511 = vpack.c.b16 %v1456, %v1455
        %v1512 = vpack.c.b16 %v1458, %v1457
        %v1513 = vpack.c.b16 %v1460, %v1459
        %v1514 = vpack.c.b16 %v1462, %v1461
        %v1515 = vpack.c.b16 %v1464, %v1463
        %v1516 = vpack.c.b16 %v1466, %v1465
        %v1517 = vpack.c.b16 %v1468, %v1467
        %v1518 = vpack.c.b16 %v1470, %v1469
        %v1519 = vpack.c.b16 %v1472, %v1471
        %v1520 = vpack.c.b16 %v1474, %v1473
        %v1521 = vpack.c.b16 %v1476, %v1475
        %v1522 = vpack.c.b16 %v1478, %v1477
        %v1523 = vpack.c.b16 %v1480, %v1479
        %v1524 = vpack.c.b16 %v1482, %v1481
        %v1525 = vpack.c.b16 %v1484, %v1483
        %v1526 = vpack.c.b16 %v1486, %v1485
        %v1527 = vpack.c.b16 %v1488, %v1487
        %v1528 = vpack.c.b16 %v1490, %v1489
        %v1529 = vpack.c.b16 %v1492, %v1491
        %v1530 = vpack.c.b16 %v1494, %v1493
        %v1531 = vpack.c.b16 %v1496, %v1495
        %v1532 = vpack.c.b16 %v1498, %v1497
        %v1533 = vpack.c.b16 %v1500, %v1499
        %v1534 = vpack.c.b16 %v1502, %v1501
        %1567 = vmatprep.subr.bf16.mxu0 0
        %1568 = vmatpush1.bf16.msra.mxu0 %v1503
        %1569 = vmatprep.subr.bf16.mxu0 0
        %1570 = vmatpush1.bf16.msra.mxu0 %v1504
        %1571 = vmatprep.subr.bf16.mxu0 0
        %1572 = vmatpush1.bf16.msra.mxu0 %v1505
        %1573 = vmatprep.subr.bf16.mxu0 0
        %1574 = vmatpush1.bf16.msra.mxu0 %v1506
        %1575 = vmatprep.subr.bf16.mxu0 0
        %1576 = vmatpush1.bf16.msra.mxu0 %v1507
        %1577 = vmatprep.subr.bf16.mxu0 0
        %1578 = vmatpush1.bf16.msra.mxu0 %v1508
        %1579 = vmatprep.subr.bf16.mxu0 0
        %1580 = vmatpush1.bf16.msra.mxu0 %v1509
        %1581 = vmatprep.subr.bf16.mxu0 0
        %1582 = vmatpush1.bf16.msra.mxu0 %v1510
        %1583 = vmatprep.subr.bf16.mxu0 0
        %1584 = vmatpush1.bf16.msra.mxu0 %v1511
        %1585 = vmatprep.subr.bf16.mxu0 0
        %1586 = vmatpush1.bf16.msra.mxu0 %v1512
        %1587 = vmatprep.subr.bf16.mxu0 0
        %1588 = vmatpush1.bf16.msra.mxu0 %v1513
        %1589 = vmatprep.subr.bf16.mxu0 0
        %1590 = vmatpush1.bf16.msra.mxu0 %v1514
        %1591 = vmatprep.subr.bf16.mxu0 0
        %1592 = vmatpush1.bf16.msra.mxu0 %v1515
        %1593 = vmatprep.subr.bf16.mxu0 0
        %1594 = vmatpush1.bf16.msra.mxu0 %v1516
        %1595 = vmatprep.subr.bf16.mxu0 0
        %1596 = vmatpush1.bf16.msra.mxu0 %v1517
        %1597 = vmatprep.subr.bf16.mxu0 0
        %1598 = vmatpush1.bf16.msra.mxu0 %v1518
        %1599 = vmatprep.mubr.bf16.mxu0 %v1294
        %1600 = vmatmul.mubr.bf16.gmra.mrb[0].mxu0 %v1293
        %v1601 = vpop.f32.mrb[0].mxu0
        %v1602 = vadd.f32 0.0, %v1601
        %v1603 = vpop.f32.mrb[0].mxu0
        %v1604 = vpop.f32.mrb[0].mxu0
        %v1605 = vadd.f32 0.0, %v1604
        %v1606 = vpop.f32.mrb[0].mxu0
        %1607 = vdwg.mxu0
        %1608 = vmatprep.subr.bf16.mxu0 0
        %1609 = vmatpush1.bf16.msra.mxu0 %v1519
        %1610 = vmatprep.subr.bf16.mxu0 0
        %1611 = vmatpush1.bf16.msra.mxu0 %v1520
        %1612 = vmatprep.subr.bf16.mxu0 0
        %1613 = vmatpush1.bf16.msra.mxu0 %v1521
        %1614 = vmatprep.subr.bf16.mxu0 0
        %1615 = vmatpush1.bf16.msra.mxu0 %v1522
        %1616 = vmatprep.subr.bf16.mxu0 0
        %1617 = vmatpush1.bf16.msra.mxu0 %v1523
        %1618 = vmatprep.subr.bf16.mxu0 0
        %1619 = vmatpush1.bf16.msra.mxu0 %v1524
        %1620 = vmatprep.subr.bf16.mxu0 0
        %1621 = vmatpush1.bf16.msra.mxu0 %v1525
        %1622 = vmatprep.subr.bf16.mxu0 0
        %1623 = vmatpush1.bf16.msra.mxu0 %v1526
        %1624 = vmatprep.subr.bf16.mxu0 0
        %1625 = vmatpush1.bf16.msra.mxu0 %v1527
        %1626 = vmatprep.subr.bf16.mxu0 0
        %1627 = vmatpush1.bf16.msra.mxu0 %v1528
        %1628 = vmatprep.subr.bf16.mxu0 0
        %1629 = vmatpush1.bf16.msra.mxu0 %v1529
        %1630 = vmatprep.subr.bf16.mxu0 0
        %1631 = vmatpush1.bf16.msra.mxu0 %v1530
        %1632 = vmatprep.subr.bf16.mxu0 0
        %1633 = vmatpush1.bf16.msra.mxu0 %v1531
        %1634 = vmatprep.subr.bf16.mxu0 0
        %1635 = vmatpush1.bf16.msra.mxu0 %v1532
        %1636 = vmatprep.subr.bf16.mxu0 0
        %1637 = vmatpush1.bf16.msra.mxu0 %v1533
        %1638 = vmatprep.subr.bf16.mxu0 0
        %1639 = vmatpush1.bf16.msra.mxu0 %v1534
        %1640 = vmatprep.mubr.bf16.mxu0 %v1296
        %1641 = vmatmul.mubr.bf16.gmra.mrb[0].mxu0 %v1295
        %v1642 = vpop.f32.mrb[0].mxu0
        %v1643 = vadd.f32 %v1602, %v1642
        %v1644 = vpop.f32.mrb[0].mxu0
        %v1645 = vpop.f32.mrb[0].mxu0
        %v1646 = vadd.f32 %v1605, %v1645
        %v1647 = vpop.f32.mrb[0].mxu0
        %1648 = vdwg.mxu0
        %vm1651 = vcmask 1041408
        %v1652 = vrot.slane %v1643, 6
        %v1653 = vrot.slane %v1646, 6
        %v1654 = vsel %vm1651, %v1652, %v1653
        %v1658 = vadd.f32 %v1308, %v1652
        %v1659 = vadd.f32 %v1309, %v1654
        %v1660 = vadd.f32 %v1310, %v1653
        %s1661 = scalar_lea.vmem [#allocation5], 256
        %v1662 = vld [vmem:[%s1661] sm:$0xf]
        %v1663 = vld [vmem:[%s1661 + $0x4] sm:$0xf]
        %v1664 = vld [vmem:[%s1661 + $0x8] sm:$0xf]
        %v1665 = vld [vmem:[%s1661 + $0xc] sm:$0xf]
        %v1666 = vld [vmem:[%s1661 + $0x10] sm:$0xf]
        %v1667 = vld [vmem:[%s1661 + $0x14] sm:$0xf]
        %v1668 = vld [vmem:[%s1661 + $0x18] sm:$0xf]
        %v1669 = vld [vmem:[%s1661 + $0x1c] sm:$0xf]
        %v1670 = vld [vmem:[%s1661 + $0x20] sm:$0xf]
        %v1671 = vld [vmem:[%s1661 + $0x24] sm:$0xf]
        %v1672 = vld [vmem:[%s1661 + $0x28] sm:$0xf]
        %v1673 = vld [vmem:[%s1661 + $0x2c] sm:$0xf]
        %v1674 = vld [vmem:[%s1661 + $0x30] sm:$0xf]
        %v1675 = vld [vmem:[%s1661 + $0x34] sm:$0xf]
        %v1676 = vld [vmem:[%s1661 + $0x38] sm:$0xf]
        %v1677 = vld [vmem:[%s1661 + $0x3c] sm:$0xf]
        %v1678 = vld [vmem:[%s1661 + $0x40] sm:$0xf]
        %v1679 = vld [vmem:[%s1661 + $0x44] sm:$0xf]
        %v1680 = vld [vmem:[%s1661 + $0x48] sm:$0xf]
        %v1681 = vld [vmem:[%s1661 + $0x4c] sm:$0xf]
        %v1682 = vld [vmem:[%s1661 + $0x50] sm:$0xf]
        %v1683 = vld [vmem:[%s1661 + $0x54] sm:$0xf]
        %v1684 = vld [vmem:[%s1661 + $0x58] sm:$0xf]
        %v1685 = vld [vmem:[%s1661 + $0x5c] sm:$0xf]
        %v1686 = vld [vmem:[%s1661 + $0x60] sm:$0xf]
        %v1687 = vld [vmem:[%s1661 + $0x64] sm:$0xf]
        %v1688 = vld [vmem:[%s1661 + $0x68] sm:$0xf]
        %v1689 = vld [vmem:[%s1661 + $0x6c] sm:$0xf]
        %v1690 = vld [vmem:[%s1661 + $0x70] sm:$0xf]
        %v1691 = vld [vmem:[%s1661 + $0x74] sm:$0xf]
        %v1692 = vld [vmem:[%s1661 + $0x78] sm:$0xf]
        %v1693 = vld [vmem:[%s1661 + $0x7c] sm:$0xf]
        %v1694 = vld [vmem:[%s1661 + $0x80] sm:$0xf]
        %v1695 = vld [vmem:[%s1661 + $0x84] sm:$0xf]
        %v1696 = vld [vmem:[%s1661 + $0x88] sm:$0xf]
        %v1697 = vld [vmem:[%s1661 + $0x8c] sm:$0xf]
        %v1698 = vld [vmem:[%s1661 + $0x90] sm:$0xf]
        %v1699 = vld [vmem:[%s1661 + $0x94] sm:$0xf]
        %v1700 = vld [vmem:[%s1661 + $0x98] sm:$0xf]
        %v1701 = vld [vmem:[%s1661 + $0x9c] sm:$0xf]
        %v1702 = vld [vmem:[%s1661 + $0xa0] sm:$0xf]
        %v1703 = vld [vmem:[%s1661 + $0xa4] sm:$0xf]
        %v1704 = vld [vmem:[%s1661 + $0xa8] sm:$0xf]
        %v1705 = vld [vmem:[%s1661 + $0xac] sm:$0xf]
        %v1706 = vld [vmem:[%s1661 + $0xb0] sm:$0xf]
        %v1707 = vld [vmem:[%s1661 + $0xb4] sm:$0xf]
        %v1708 = vld [vmem:[%s1661 + $0xb8] sm:$0xf]
        %v1709 = vld [vmem:[%s1661 + $0xbc] sm:$0xf]
        %v1710 = vld [vmem:[%s1661 + $0xc0] sm:$0xf]
        %v1711 = vld [vmem:[%s1661 + $0xc4] sm:$0xf]
        %v1712 = vld [vmem:[%s1661 + $0xc8] sm:$0xf]
        %v1713 = vld [vmem:[%s1661 + $0xcc] sm:$0xf]
        %v1714 = vld [vmem:[%s1661 + $0xd0] sm:$0xf]
        %v1715 = vld [vmem:[%s1661 + $0xd4] sm:$0xf]
        %v1716 = vld [vmem:[%s1661 + $0xd8] sm:$0xf]
        %v1717 = vld [vmem:[%s1661 + $0xdc] sm:$0xf]
        %v1718 = vld [vmem:[%s1661 + $0xe0] sm:$0xf]
        %v1719 = vld [vmem:[%s1661 + $0xe4] sm:$0xf]
        %v1720 = vld [vmem:[%s1661 + $0xe8] sm:$0xf]
        %v1721 = vld [vmem:[%s1661 + $0xec] sm:$0xf]
        %v1722 = vld [vmem:[%s1661 + $0xf0] sm:$0xf]
        %v1723 = vld [vmem:[%s1661 + $0xf4] sm:$0xf]
        %v1724 = vld [vmem:[%s1661 + $0xf8] sm:$0xf]
        %v1725 = vld [vmem:[%s1661 + $0xfc] sm:$0xf]
        %v1727 = vshrl.u32 %v1293, 16
        %v1729 = vshll.u32 %v1293, 16
        %v1731 = vrot.slane %v1729, 1
        %v1732 = vor.u32 %v1727, %v1731
        %v1734 = vshll.u32 %v1297, 16
        %v1736 = vrot.slane %v1734, 1
        %v1737 = vsel %vm649, %v1732, %v1736
        %v1739 = vshrl.u32 %v1294, 16
        %v1741 = vshll.u32 %v1294, 16
        %v1743 = vrot.slane %v1741, 1
        %v1744 = vor.u32 %v1739, %v1743
        %v1746 = vshll.u32 %v1298, 16
        %v1748 = vrot.slane %v1746, 1
        %v1749 = vsel %vm649, %v1744, %v1748
        %v1751 = vshrl.u32 %v1295, 16
        %v1753 = vshll.u32 %v1295, 16
        %v1755 = vrot.slane %v1753, 1
        %v1756 = vor.u32 %v1751, %v1755
        %v1758 = vshll.u32 %v1299, 16
        %v1760 = vrot.slane %v1758, 1
        %v1761 = vsel %vm649, %v1756, %v1760
        %v1763 = vshrl.u32 %v1296, 16
        %v1765 = vshll.u32 %v1296, 16
        %v1767 = vrot.slane %v1765, 1
        %v1768 = vor.u32 %v1763, %v1767
        %v1770 = vshll.u32 %v1300, 16
        %v1772 = vrot.slane %v1770, 1
        %v1773 = vsel %vm649, %v1768, %v1772
        %v1842 = vunpack.c.l.b16 %v1662
        %v1843 = vunpack.c.l.b16 %v1663
        %v1844 = vunpack.c.l.b16 %v1664
        %v1845 = vunpack.c.l.b16 %v1665
        %v1846 = vunpack.c.l.b16 %v1666
        %v1847 = vunpack.c.l.b16 %v1667
        %v1848 = vunpack.c.l.b16 %v1668
        %v1849 = vunpack.c.l.b16 %v1669
        %v1850 = vunpack.c.l.b16 %v1670
        %v1851 = vunpack.c.l.b16 %v1671
        %v1852 = vunpack.c.l.b16 %v1672
        %v1853 = vunpack.c.l.b16 %v1673
        %v1854 = vunpack.c.l.b16 %v1674
        %v1855 = vunpack.c.l.b16 %v1675
        %v1856 = vunpack.c.l.b16 %v1676
        %v1857 = vunpack.c.l.b16 %v1677
        %v1858 = vunpack.c.l.b16 %v1678
        %v1859 = vunpack.c.l.b16 %v1679
        %v1860 = vunpack.c.l.b16 %v1680
        %v1861 = vunpack.c.l.b16 %v1681
        %v1862 = vunpack.c.l.b16 %v1682
        %v1863 = vunpack.c.l.b16 %v1683
        %v1864 = vunpack.c.l.b16 %v1684
        %v1865 = vunpack.c.l.b16 %v1685
        %v1866 = vunpack.c.l.b16 %v1686
        %v1867 = vunpack.c.l.b16 %v1687
        %v1868 = vunpack.c.l.b16 %v1688
        %v1869 = vunpack.c.l.b16 %v1689
        %v1870 = vunpack.c.l.b16 %v1690
        %v1871 = vunpack.c.l.b16 %v1691
        %v1872 = vunpack.c.l.b16 %v1692
        %v1873 = vunpack.c.l.b16 %v1693
        %v1874 = vunpack.c.l.b16 %v1694
        %v1875 = vunpack.c.l.b16 %v1695
        %v1876 = vunpack.c.l.b16 %v1696
        %v1877 = vunpack.c.l.b16 %v1697
        %v1878 = vunpack.c.l.b16 %v1698
        %v1879 = vunpack.c.l.b16 %v1699
        %v1880 = vunpack.c.l.b16 %v1700
        %v1881 = vunpack.c.l.b16 %v1701
        %v1882 = vunpack.c.l.b16 %v1702
        %v1883 = vunpack.c.l.b16 %v1703
        %v1884 = vunpack.c.l.b16 %v1704
        %v1885 = vunpack.c.l.b16 %v1705
        %v1886 = vunpack.c.l.b16 %v1706
        %v1887 = vunpack.c.l.b16 %v1707
        %v1888 = vunpack.c.l.b16 %v1708
        %v1889 = vunpack.c.l.b16 %v1709
        %v1890 = vunpack.c.l.b16 %v1710
        %v1891 = vunpack.c.l.b16 %v1711
        %v1892 = vunpack.c.l.b16 %v1712
        %v1893 = vunpack.c.l.b16 %v1713
        %v1894 = vunpack.c.l.b16 %v1714
        %v1895 = vunpack.c.l.b16 %v1715
        %v1896 = vunpack.c.l.b16 %v1716
        %v1897 = vunpack.c.l.b16 %v1717
        %v1898 = vunpack.c.l.b16 %v1718
        %v1899 = vunpack.c.l.b16 %v1719
        %v1900 = vunpack.c.l.b16 %v1720
        %v1901 = vunpack.c.l.b16 %v1721
        %v1902 = vunpack.c.l.b16 %v1722
        %v1903 = vunpack.c.l.b16 %v1723
        %v1904 = vunpack.c.l.b16 %v1724
        %v1905 = vunpack.c.l.b16 %v1725
        %v1906 = vpack.c.b16 %v1843, %v1842
        %v1907 = vpack.c.b16 %v1845, %v1844
        %v1908 = vpack.c.b16 %v1847, %v1846
        %v1909 = vpack.c.b16 %v1849, %v1848
        %v1910 = vpack.c.b16 %v1851, %v1850
        %v1911 = vpack.c.b16 %v1853, %v1852
        %v1912 = vpack.c.b16 %v1855, %v1854
        %v1913 = vpack.c.b16 %v1857, %v1856
        %v1914 = vpack.c.b16 %v1859, %v1858
        %v1915 = vpack.c.b16 %v1861, %v1860
        %v1916 = vpack.c.b16 %v1863, %v1862
        %v1917 = vpack.c.b16 %v1865, %v1864
        %v1918 = vpack.c.b16 %v1867, %v1866
        %v1919 = vpack.c.b16 %v1869, %v1868
        %v1920 = vpack.c.b16 %v1871, %v1870
        %v1921 = vpack.c.b16 %v1873, %v1872
        %v1922 = vpack.c.b16 %v1875, %v1874
        %v1923 = vpack.c.b16 %v1877, %v1876
        %v1924 = vpack.c.b16 %v1879, %v1878
        %v1925 = vpack.c.b16 %v1881, %v1880
        %v1926 = vpack.c.b16 %v1883, %v1882
        %v1927 = vpack.c.b16 %v1885, %v1884
        %v1928 = vpack.c.b16 %v1887, %v1886
        %v1929 = vpack.c.b16 %v1889, %v1888
        %v1930 = vpack.c.b16 %v1891, %v1890
        %v1931 = vpack.c.b16 %v1893, %v1892
        %v1932 = vpack.c.b16 %v1895, %v1894
        %v1933 = vpack.c.b16 %v1897, %v1896
        %v1934 = vpack.c.b16 %v1899, %v1898
        %v1935 = vpack.c.b16 %v1901, %v1900
        %v1936 = vpack.c.b16 %v1903, %v1902
        %v1937 = vpack.c.b16 %v1905, %v1904
        %1970 = vmatprep.subr.bf16.mxu0 0
        %1971 = vmatpush1.bf16.msra.mxu0 %v1906
        %1972 = vmatprep.subr.bf16.mxu0 0
        %1973 = vmatpush1.bf16.msra.mxu0 %v1907
        %1974 = vmatprep.subr.bf16.mxu0 0
        %1975 = vmatpush1.bf16.msra.mxu0 %v1908
        %1976 = vmatprep.subr.bf16.mxu0 0
        %1977 = vmatpush1.bf16.msra.mxu0 %v1909
        %1978 = vmatprep.subr.bf16.mxu0 0
        %1979 = vmatpush1.bf16.msra.mxu0 %v1910
        %1980 = vmatprep.subr.bf16.mxu0 0
        %1981 = vmatpush1.bf16.msra.mxu0 %v1911
        %1982 = vmatprep.subr.bf16.mxu0 0
        %1983 = vmatpush1.bf16.msra.mxu0 %v1912
        %1984 = vmatprep.subr.bf16.mxu0 0
        %1985 = vmatpush1.bf16.msra.mxu0 %v1913
        %1986 = vmatprep.subr.bf16.mxu0 0
        %1987 = vmatpush1.bf16.msra.mxu0 %v1914
        %1988 = vmatprep.subr.bf16.mxu0 0
        %1989 = vmatpush1.bf16.msra.mxu0 %v1915
        %1990 = vmatprep.subr.bf16.mxu0 0
        %1991 = vmatpush1.bf16.msra.mxu0 %v1916
        %1992 = vmatprep.subr.bf16.mxu0 0
        %1993 = vmatpush1.bf16.msra.mxu0 %v1917
        %1994 = vmatprep.subr.bf16.mxu0 0
        %1995 = vmatpush1.bf16.msra.mxu0 %v1918
        %1996 = vmatprep.subr.bf16.mxu0 0
        %1997 = vmatpush1.bf16.msra.mxu0 %v1919
        %1998 = vmatprep.subr.bf16.mxu0 0
        %1999 = vmatpush1.bf16.msra.mxu0 %v1920
        %2000 = vmatprep.subr.bf16.mxu0 0
        %2001 = vmatpush1.bf16.msra.mxu0 %v1921
        %2002 = vmatprep.mubr.bf16.mxu0 %v1749
        %2003 = vmatmul.mubr.bf16.gmra.mrb[0].mxu0 %v1737
        %v2004 = vpop.f32.mrb[0].mxu0
        %v2005 = vadd.f32 0.0, %v2004
        %v2006 = vpop.f32.mrb[0].mxu0
        %v2007 = vpop.f32.mrb[0].mxu0
        %v2008 = vadd.f32 0.0, %v2007
        %v2009 = vpop.f32.mrb[0].mxu0
        %2010 = vdwg.mxu0
        %2011 = vmatprep.subr.bf16.mxu0 0
        %2012 = vmatpush1.bf16.msra.mxu0 %v1922
        %2013 = vmatprep.subr.bf16.mxu0 0
        %2014 = vmatpush1.bf16.msra.mxu0 %v1923
        %2015 = vmatprep.subr.bf16.mxu0 0
        %2016 = vmatpush1.bf16.msra.mxu0 %v1924
        %2017 = vmatprep.subr.bf16.mxu0 0
        %2018 = vmatpush1.bf16.msra.mxu0 %v1925
        %2019 = vmatprep.subr.bf16.mxu0 0
        %2020 = vmatpush1.bf16.msra.mxu0 %v1926
        %2021 = vmatprep.subr.bf16.mxu0 0
        %2022 = vmatpush1.bf16.msra.mxu0 %v1927
        %2023 = vmatprep.subr.bf16.mxu0 0
        %2024 = vmatpush1.bf16.msra.mxu0 %v1928
        %2025 = vmatprep.subr.bf16.mxu0 0
        %2026 = vmatpush1.bf16.msra.mxu0 %v1929
        %2027 = vmatprep.subr.bf16.mxu0 0
        %2028 = vmatpush1.bf16.msra.mxu0 %v1930
        %2029 = vmatprep.subr.bf16.mxu0 0
        %2030 = vmatpush1.bf16.msra.mxu0 %v1931
        %2031 = vmatprep.subr.bf16.mxu0 0
        %2032 = vmatpush1.bf16.msra.mxu0 %v1932
        %2033 = vmatprep.subr.bf16.mxu0 0
        %2034 = vmatpush1.bf16.msra.mxu0 %v1933
        %2035 = vmatprep.subr.bf16.mxu0 0
        %2036 = vmatpush1.bf16.msra.mxu0 %v1934
        %2037 = vmatprep.subr.bf16.mxu0 0
        %2038 = vmatpush1.bf16.msra.mxu0 %v1935
        %2039 = vmatprep.subr.bf16.mxu0 0
        %2040 = vmatpush1.bf16.msra.mxu0 %v1936
        %2041 = vmatprep.subr.bf16.mxu0 0
        %2042 = vmatpush1.bf16.msra.mxu0 %v1937
        %2043 = vmatprep.mubr.bf16.mxu0 %v1773
        %2044 = vmatmul.mubr.bf16.gmra.mrb[0].mxu0 %v1761
        %v2045 = vpop.f32.mrb[0].mxu0
        %v2046 = vadd.f32 %v2005, %v2045
        %v2047 = vpop.f32.mrb[0].mxu0
        %v2048 = vpop.f32.mrb[0].mxu0
        %v2049 = vadd.f32 %v2008, %v2048
        %v2050 = vpop.f32.mrb[0].mxu0
        %2051 = vdwg.mxu0
        %v2054 = vrot.slane %v2046, 6
        %v2055 = vrot.slane %v2049, 6
        %v2056 = vsel %vm1651, %v2054, %v2055
        %v2060 = vadd.f32 %v1658, %v2054
        %v2061 = vadd.f32 %v1659, %v2056
        %v2062 = vadd.f32 %v1660, %v2055
        %s2063 = scalar_lea.vmem [#allocation5], 512
        %v2064 = vld [vmem:[%s2063] sm:$0xf]
        %v2065 = vld [vmem:[%s2063 + $0x4] sm:$0xf]
        %v2066 = vld [vmem:[%s2063 + $0x8] sm:$0xf]
        %v2067 = vld [vmem:[%s2063 + $0xc] sm:$0xf]
        %v2068 = vld [vmem:[%s2063 + $0x10] sm:$0xf]
        %v2069 = vld [vmem:[%s2063 + $0x14] sm:$0xf]
        %v2070 = vld [vmem:[%s2063 + $0x18] sm:$0xf]
        %v2071 = vld [vmem:[%s2063 + $0x1c] sm:$0xf]
        %v2072 = vld [vmem:[%s2063 + $0x20] sm:$0xf]
        %v2073 = vld [vmem:[%s2063 + $0x24] sm:$0xf]
        %v2074 = vld [vmem:[%s2063 + $0x28] sm:$0xf]
        %v2075 = vld [vmem:[%s2063 + $0x2c] sm:$0xf]
        %v2076 = vld [vmem:[%s2063 + $0x30] sm:$0xf]
        %v2077 = vld [vmem:[%s2063 + $0x34] sm:$0xf]
        %v2078 = vld [vmem:[%s2063 + $0x38] sm:$0xf]
        %v2079 = vld [vmem:[%s2063 + $0x3c] sm:$0xf]
        %v2080 = vld [vmem:[%s2063 + $0x40] sm:$0xf]
        %v2081 = vld [vmem:[%s2063 + $0x44] sm:$0xf]
        %v2082 = vld [vmem:[%s2063 + $0x48] sm:$0xf]
        %v2083 = vld [vmem:[%s2063 + $0x4c] sm:$0xf]
        %v2084 = vld [vmem:[%s2063 + $0x50] sm:$0xf]
        %v2085 = vld [vmem:[%s2063 + $0x54] sm:$0xf]
        %v2086 = vld [vmem:[%s2063 + $0x58] sm:$0xf]
        %v2087 = vld [vmem:[%s2063 + $0x5c] sm:$0xf]
        %v2088 = vld [vmem:[%s2063 + $0x60] sm:$0xf]
        %v2089 = vld [vmem:[%s2063 + $0x64] sm:$0xf]
        %v2090 = vld [vmem:[%s2063 + $0x68] sm:$0xf]
        %v2091 = vld [vmem:[%s2063 + $0x6c] sm:$0xf]
        %v2092 = vld [vmem:[%s2063 + $0x70] sm:$0xf]
        %v2093 = vld [vmem:[%s2063 + $0x74] sm:$0xf]
        %v2094 = vld [vmem:[%s2063 + $0x78] sm:$0xf]
        %v2095 = vld [vmem:[%s2063 + $0x7c] sm:$0xf]
        %v2096 = vld [vmem:[%s2063 + $0x80] sm:$0xf]
        %v2097 = vld [vmem:[%s2063 + $0x84] sm:$0xf]
        %v2098 = vld [vmem:[%s2063 + $0x88] sm:$0xf]
        %v2099 = vld [vmem:[%s2063 + $0x8c] sm:$0xf]
        %v2100 = vld [vmem:[%s2063 + $0x90] sm:$0xf]
        %v2101 = vld [vmem:[%s2063 + $0x94] sm:$0xf]
        %v2102 = vld [vmem:[%s2063 + $0x98] sm:$0xf]
        %v2103 = vld [vmem:[%s2063 + $0x9c] sm:$0xf]
        %v2104 = vld [vmem:[%s2063 + $0xa0] sm:$0xf]
        %v2105 = vld [vmem:[%s2063 + $0xa4] sm:$0xf]
        %v2106 = vld [vmem:[%s2063 + $0xa8] sm:$0xf]
        %v2107 = vld [vmem:[%s2063 + $0xac] sm:$0xf]
        %v2108 = vld [vmem:[%s2063 + $0xb0] sm:$0xf]
        %v2109 = vld [vmem:[%s2063 + $0xb4] sm:$0xf]
        %v2110 = vld [vmem:[%s2063 + $0xb8] sm:$0xf]
        %v2111 = vld [vmem:[%s2063 + $0xbc] sm:$0xf]
        %v2112 = vld [vmem:[%s2063 + $0xc0] sm:$0xf]
        %v2113 = vld [vmem:[%s2063 + $0xc4] sm:$0xf]
        %v2114 = vld [vmem:[%s2063 + $0xc8] sm:$0xf]
        %v2115 = vld [vmem:[%s2063 + $0xcc] sm:$0xf]
        %v2116 = vld [vmem:[%s2063 + $0xd0] sm:$0xf]
        %v2117 = vld [vmem:[%s2063 + $0xd4] sm:$0xf]
        %v2118 = vld [vmem:[%s2063 + $0xd8] sm:$0xf]
        %v2119 = vld [vmem:[%s2063 + $0xdc] sm:$0xf]
        %v2120 = vld [vmem:[%s2063 + $0xe0] sm:$0xf]
        %v2121 = vld [vmem:[%s2063 + $0xe4] sm:$0xf]
        %v2122 = vld [vmem:[%s2063 + $0xe8] sm:$0xf]
        %v2123 = vld [vmem:[%s2063 + $0xec] sm:$0xf]
        %v2124 = vld [vmem:[%s2063 + $0xf0] sm:$0xf]
        %v2125 = vld [vmem:[%s2063 + $0xf4] sm:$0xf]
        %v2126 = vld [vmem:[%s2063 + $0xf8] sm:$0xf]
        %v2127 = vld [vmem:[%s2063 + $0xfc] sm:$0xf]
        %v2136 = vrot.slane %v1293, 1
        %v2137 = vrot.slane %v1297, 1
        %v2138 = vsel %vm976, %v2136, %v2137
        %v2139 = vrot.slane %v1294, 1
        %v2140 = vrot.slane %v1298, 1
        %v2141 = vsel %vm976, %v2139, %v2140
        %v2142 = vrot.slane %v1295, 1
        %v2143 = vrot.slane %v1299, 1
        %v2144 = vsel %vm976, %v2142, %v2143
        %v2145 = vrot.slane %v1296, 1
        %v2146 = vrot.slane %v1300, 1
        %v2147 = vsel %vm976, %v2145, %v2146
        %v2216 = vunpack.c.l.b16 %v2064
        %v2217 = vunpack.c.l.b16 %v2065
        %v2218 = vunpack.c.l.b16 %v2066
        %v2219 = vunpack.c.l.b16 %v2067
        %v2220 = vunpack.c.l.b16 %v2068
        %v2221 = vunpack.c.l.b16 %v2069
        %v2222 = vunpack.c.l.b16 %v2070
        %v2223 = vunpack.c.l.b16 %v2071
        %v2224 = vunpack.c.l.b16 %v2072
        %v2225 = vunpack.c.l.b16 %v2073
        %v2226 = vunpack.c.l.b16 %v2074
        %v2227 = vunpack.c.l.b16 %v2075
        %v2228 = vunpack.c.l.b16 %v2076
        %v2229 = vunpack.c.l.b16 %v2077
        %v2230 = vunpack.c.l.b16 %v2078
        %v2231 = vunpack.c.l.b16 %v2079
        %v2232 = vunpack.c.l.b16 %v2080
        %v2233 = vunpack.c.l.b16 %v2081
        %v2234 = vunpack.c.l.b16 %v2082
        %v2235 = vunpack.c.l.b16 %v2083
        %v2236 = vunpack.c.l.b16 %v2084
        %v2237 = vunpack.c.l.b16 %v2085
        %v2238 = vunpack.c.l.b16 %v2086
        %v2239 = vunpack.c.l.b16 %v2087
        %v2240 = vunpack.c.l.b16 %v2088
        %v2241 = vunpack.c.l.b16 %v2089
        %v2242 = vunpack.c.l.b16 %v2090
        %v2243 = vunpack.c.l.b16 %v2091
        %v2244 = vunpack.c.l.b16 %v2092
        %v2245 = vunpack.c.l.b16 %v2093
        %v2246 = vunpack.c.l.b16 %v2094
        %v2247 = vunpack.c.l.b16 %v2095
        %v2248 = vunpack.c.l.b16 %v2096
        %v2249 = vunpack.c.l.b16 %v2097
        %v2250 = vunpack.c.l.b16 %v2098
        %v2251 = vunpack.c.l.b16 %v2099
        %v2252 = vunpack.c.l.b16 %v2100
        %v2253 = vunpack.c.l.b16 %v2101
        %v2254 = vunpack.c.l.b16 %v2102
        %v2255 = vunpack.c.l.b16 %v2103
        %v2256 = vunpack.c.l.b16 %v2104
        %v2257 = vunpack.c.l.b16 %v2105
        %v2258 = vunpack.c.l.b16 %v2106
        %v2259 = vunpack.c.l.b16 %v2107
        %v2260 = vunpack.c.l.b16 %v2108
        %v2261 = vunpack.c.l.b16 %v2109
        %v2262 = vunpack.c.l.b16 %v2110
        %v2263 = vunpack.c.l.b16 %v2111
        %v2264 = vunpack.c.l.b16 %v2112
        %v2265 = vunpack.c.l.b16 %v2113
        %v2266 = vunpack.c.l.b16 %v2114
        %v2267 = vunpack.c.l.b16 %v2115
        %v2268 = vunpack.c.l.b16 %v2116
        %v2269 = vunpack.c.l.b16 %v2117
        %v2270 = vunpack.c.l.b16 %v2118
        %v2271 = vunpack.c.l.b16 %v2119
        %v2272 = vunpack.c.l.b16 %v2120
        %v2273 = vunpack.c.l.b16 %v2121
        %v2274 = vunpack.c.l.b16 %v2122
        %v2275 = vunpack.c.l.b16 %v2123
        %v2276 = vunpack.c.l.b16 %v2124
        %v2277 = vunpack.c.l.b16 %v2125
        %v2278 = vunpack.c.l.b16 %v2126
        %v2279 = vunpack.c.l.b16 %v2127
        %v2280 = vpack.c.b16 %v2217, %v2216
        %v2281 = vpack.c.b16 %v2219, %v2218
        %v2282 = vpack.c.b16 %v2221, %v2220
        %v2283 = vpack.c.b16 %v2223, %v2222
        %v2284 = vpack.c.b16 %v2225, %v2224
        %v2285 = vpack.c.b16 %v2227, %v2226
        %v2286 = vpack.c.b16 %v2229, %v2228
        %v2287 = vpack.c.b16 %v2231, %v2230
        %v2288 = vpack.c.b16 %v2233, %v2232
        %v2289 = vpack.c.b16 %v2235, %v2234
        %v2290 = vpack.c.b16 %v2237, %v2236
        %v2291 = vpack.c.b16 %v2239, %v2238
        %v2292 = vpack.c.b16 %v2241, %v2240
        %v2293 = vpack.c.b16 %v2243, %v2242
        %v2294 = vpack.c.b16 %v2245, %v2244
        %v2295 = vpack.c.b16 %v2247, %v2246
        %v2296 = vpack.c.b16 %v2249, %v2248
        %v2297 = vpack.c.b16 %v2251, %v2250
        %v2298 = vpack.c.b16 %v2253, %v2252
        %v2299 = vpack.c.b16 %v2255, %v2254
        %v2300 = vpack.c.b16 %v2257, %v2256
        %v2301 = vpack.c.b16 %v2259, %v2258
        %v2302 = vpack.c.b16 %v2261, %v2260
        %v2303 = vpack.c.b16 %v2263, %v2262
        %v2304 = vpack.c.b16 %v2265, %v2264
        %v2305 = vpack.c.b16 %v2267, %v2266
        %v2306 = vpack.c.b16 %v2269, %v2268
        %v2307 = vpack.c.b16 %v2271, %v2270
        %v2308 = vpack.c.b16 %v2273, %v2272
        %v2309 = vpack.c.b16 %v2275, %v2274
        %v2310 = vpack.c.b16 %v2277, %v2276
        %v2311 = vpack.c.b16 %v2279, %v2278
        %2344 = vmatprep.subr.bf16.mxu0 0
        %2345 = vmatpush1.bf16.msra.mxu0 %v2280
        %2346 = vmatprep.subr.bf16.mxu0 0
        %2347 = vmatpush1.bf16.msra.mxu0 %v2281
        %2348 = vmatprep.subr.bf16.mxu0 0
        %2349 = vmatpush1.bf16.msra.mxu0 %v2282
        %2350 = vmatprep.subr.bf16.mxu0 0
        %2351 = vmatpush1.bf16.msra.mxu0 %v2283
        %2352 = vmatprep.subr.bf16.mxu0 0
        %2353 = vmatpush1.bf16.msra.mxu0 %v2284
        %2354 = vmatprep.subr.bf16.mxu0 0
        %2355 = vmatpush1.bf16.msra.mxu0 %v2285
        %2356 = vmatprep.subr.bf16.mxu0 0
        %2357 = vmatpush1.bf16.msra.mxu0 %v2286
        %2358 = vmatprep.subr.bf16.mxu0 0
        %2359 = vmatpush1.bf16.msra.mxu0 %v2287
        %2360 = vmatprep.subr.bf16.mxu0 0
        %2361 = vmatpush1.bf16.msra.mxu0 %v2288
        %2362 = vmatprep.subr.bf16.mxu0 0
        %2363 = vmatpush1.bf16.msra.mxu0 %v2289
        %2364 = vmatprep.subr.bf16.mxu0 0
        %2365 = vmatpush1.bf16.msra.mxu0 %v2290
        %2366 = vmatprep.subr.bf16.mxu0 0
        %2367 = vmatpush1.bf16.msra.mxu0 %v2291
        %2368 = vmatprep.subr.bf16.mxu0 0
        %2369 = vmatpush1.bf16.msra.mxu0 %v2292
        %2370 = vmatprep.subr.bf16.mxu0 0
        %2371 = vmatpush1.bf16.msra.mxu0 %v2293
        %2372 = vmatprep.subr.bf16.mxu0 0
        %2373 = vmatpush1.bf16.msra.mxu0 %v2294
        %2374 = vmatprep.subr.bf16.mxu0 0
        %2375 = vmatpush1.bf16.msra.mxu0 %v2295
        %2376 = vmatprep.mubr.bf16.mxu0 %v2141
        %2377 = vmatmul.mubr.bf16.gmra.mrb[0].mxu0 %v2138
        %v2378 = vpop.f32.mrb[0].mxu0
        %v2379 = vadd.f32 0.0, %v2378
        %v2380 = vpop.f32.mrb[0].mxu0
        %v2381 = vpop.f32.mrb[0].mxu0
        %v2382 = vadd.f32 0.0, %v2381
        %v2383 = vpop.f32.mrb[0].mxu0
        %2384 = vdwg.mxu0
        %2385 = vmatprep.subr.bf16.mxu0 0
        %2386 = vmatpush1.bf16.msra.mxu0 %v2296
        %2387 = vmatprep.subr.bf16.mxu0 0
        %2388 = vmatpush1.bf16.msra.mxu0 %v2297
        %2389 = vmatprep.subr.bf16.mxu0 0
        %2390 = vmatpush1.bf16.msra.mxu0 %v2298
        %2391 = vmatprep.subr.bf16.mxu0 0
        %2392 = vmatpush1.bf16.msra.mxu0 %v2299
        %2393 = vmatprep.subr.bf16.mxu0 0
        %2394 = vmatpush1.bf16.msra.mxu0 %v2300
        %2395 = vmatprep.subr.bf16.mxu0 0
        %2396 = vmatpush1.bf16.msra.mxu0 %v2301
        %2397 = vmatprep.subr.bf16.mxu0 0
        %2398 = vmatpush1.bf16.msra.mxu0 %v2302
        %2399 = vmatprep.subr.bf16.mxu0 0
        %2400 = vmatpush1.bf16.msra.mxu0 %v2303
        %2401 = vmatprep.subr.bf16.mxu0 0
        %2402 = vmatpush1.bf16.msra.mxu0 %v2304
        %2403 = vmatprep.subr.bf16.mxu0 0
        %2404 = vmatpush1.bf16.msra.mxu0 %v2305
        %2405 = vmatprep.subr.bf16.mxu0 0
        %2406 = vmatpush1.bf16.msra.mxu0 %v2306
        %2407 = vmatprep.subr.bf16.mxu0 0
        %2408 = vmatpush1.bf16.msra.mxu0 %v2307
        %2409 = vmatprep.subr.bf16.mxu0 0
        %2410 = vmatpush1.bf16.msra.mxu0 %v2308
        %2411 = vmatprep.subr.bf16.mxu0 0
        %2412 = vmatpush1.bf16.msra.mxu0 %v2309
        %2413 = vmatprep.subr.bf16.mxu0 0
        %2414 = vmatpush1.bf16.msra.mxu0 %v2310
        %2415 = vmatprep.subr.bf16.mxu0 0
        %2416 = vmatpush1.bf16.msra.mxu0 %v2311
        %2417 = vmatprep.mubr.bf16.mxu0 %v2147
        %2418 = vmatmul.mubr.bf16.gmra.mrb[0].mxu0 %v2144
        %v2419 = vpop.f32.mrb[0].mxu0
        %v2420 = vadd.f32 %v2379, %v2419
        %v2421 = vpop.f32.mrb[0].mxu0
        %v2422 = vpop.f32.mrb[0].mxu0
        %v2423 = vadd.f32 %v2382, %v2422
        %v2424 = vpop.f32.mrb[0].mxu0
        %2425 = vdwg.mxu0
        %v2428 = vrot.slane %v2420, 6
        %v2429 = vrot.slane %v2423, 6
        %v2430 = vsel %vm1651, %v2428, %v2429
        %v2434 = vadd.f32 %v2060, %v2428
        %v2435 = vadd.f32 %v2061, %v2430
        %v2436 = vadd.f32 %v2062, %v2429
        %2437 = vst [vmem:[%s271 - $0x2] sm:$0xfc] %v2434
        %2438 = vst [vmem:[%s271 + $0x6] sm:$0xff] %v2435
        %2439 = vst [vmem:[%s271 + $0xe] sm:$0x3] %v2436
        %s2440 = sand.u32 %s155, 1
        %s2441 = scalar_lea.sflag [#allocation4], %s2440
        %s2442 = sand.u32 %s155, 1
        %s2443 = smul.addr %s2442, 16
        %s2444 = scalar_lea.vmem [#allocation7], %s2443
        // Predicated region
        $region49: #{tpu_custom_call.1} parent=39 // pred_check
          %p2445 = pneg %p165
        $region50: #{tpu_custom_call.1} parent=39 // pred_check_branch
          %2447 = sbr.rel (%p2445) target = $region52
        $region51: #{tpu_custom_call.1} parent=39 // pred_region
          %s2448 = smul.u32 2, %s26
          %s2450 = ssub.s32 256, 256
          %2451 = vsyncadd %s2441, %s2450
          %s2452 = smul.addr %s25, 2
          %s2453 = sadd.s32 %s2448, %s2452
          %s2454 = smul.addr %s2453, 128
          %s2455 = scalar_lea.hbm %s5, %s2454
          %s2456 = sshll.u32 %s2444, 4
          %s2457 = int_to_ptr.vmem [resolvable:$true] %s2456
          %2462 = dma.vmem_to_hbm [thread:$0]  %s2457, 256, %s2455, %s2441, 128, 128, 8
        $region52: #{tpu_custom_call.1} parent=39 // pred_fallthru
          _
      $region40: #{tpu_custom_call.1} parent=5 // pred_fallthru
        _
      %p2463 = scmp.le.s32.totalorder 2, %s16
      // Predicated region
      $region53: #{tpu_custom_call.1} parent=5 // pred_check
        %p2464 = pneg %p2463
      $region54: #{tpu_custom_call.1} parent=5 // pred_check_branch
        %2466 = sbr.rel (%p2464) target = $region56
      $region55: #{tpu_custom_call.1} parent=5 // pred_region
        %s2467 = ssub.s32 %s16, 2
        // Predicated region
        $region57: #{tpu_custom_call.1} parent=55 // pred_check
          %p2468 = pneg %p171
        $region58: #{tpu_custom_call.1} parent=55 // pred_check_branch
          %2470 = sbr.rel (%p2468) target = $region60
        $region59: #{tpu_custom_call.1} parent=55 // pred_region
          %s2471 = sand.u32 %s156, 1
          %s2472 = scalar_lea.sflag [#allocation4], %s2471
          %s2473 = sand.u32 %s156, 1
          %s2474 = smul.addr %s2473, 16
          %s2475 = scalar_lea.vmem [#allocation7], %s2474
          %2476 = dma.done %s2472, 256
        $region60: #{tpu_custom_call.1} parent=55 // pred_fallthru
          _
      $region56: #{tpu_custom_call.1} parent=5 // pred_fallthru
        _
    $region6: #{tpu_custom_call.1} parent=1 // loop_footer
      %s20 = sadd.s32 1, %s16
    $region7: #{tpu_custom_call.1} parent=1 // loop_footer_branch
      %15 = sbr.rel target = $region3
    $region8: #{tpu_custom_call.1} parent=1 // loop_exit
      _
    %2477 = vsyncpa [#allocation3], 1
    %s2478 = scalar_lea.sflag [#allocation3], 1
    %2479 = vsyncpa %s2478, 1
    %2480 = vsyncpa [#allocation6], 1
    %2481 = vsyncpa [#allocation4], 1
    %s2482 = scalar_lea.sflag [#allocation4], 1
    %2483 = vsyncpa %s2482, 1

</llo_original>
